<compile_context>
chip_gen: v6e
topology: v6e:2x2x1
jax: 0.10.0
libtpu: 0.0.40
codegen_flags: <defaults>
</compile_context>

<pallas_src>
import jax
import jax.numpy as jnp
import numpy as np
from jax import lax
from jax.experimental import pallas as pl
from jax.experimental.pallas import tpu as pltpu


def _round_up(x, m):
    return ((x + m - 1) // m) * m


def _tpu_vmem_capacity_bytes():
    try:
        info = pltpu.get_tpu_info()
        cap = int(getattr(info, "vmem_capacity_bytes", 0))
        if cap > 0:
            return cap
    except Exception:
        pass
    return 64 * 2**20  # conservative fallback (v7x per-TC VMEM)


def _device_kind():
    try:
        return jax.devices()[0].device_kind.lower()
    except Exception:
        return ""


# ---------------------------------------------------------------------------
# Fused kernel: all RNN layers + final FC in one pallas_call.
# ---------------------------------------------------------------------------
def _make_fused_rnn_kernel(num_layers, T, Tp, TC, n_slots, Bt, Hp, compute_dtype):
    n_chunks = Tp // TC
    carry_dtype = compute_dtype

    # vreg-pressure-aware unroll: h occupies Bt*Hp*itemsize/4096 vregs; keep the
    # unrolled live range well inside the 64-vreg file so unrolling never spills.
    h_vregs = (Bt * Hp * jnp.dtype(carry_dtype).itemsize) // 4096
    if h_vregs <= 16:
        base_unroll = TC if TC <= 32 else 8
    elif h_vregs <= 32:
        base_unroll = 4
    else:
        base_unroll = 2

    def kernel(*refs):
        x_ref = refs[0]                              # (Tp, Bt, I) time-major batch chunk
        layer_refs = refs[1:1 + 3 * num_layers]      # per layer: wih, whh, bias
        fc_w_ref = refs[1 + 3 * num_layers]          # (Hp, 128) zero-padded cols
        fc_b_ref = refs[2 + 3 * num_layers]          # (1, 128)
        out_ref = refs[3 + 3 * num_layers]           # (Bt, 128)
        gates_scr = refs[4 + 3 * num_layers]         # VMEM (n_slots*TC, Bt, Hp) f32
        seq_scr = refs[5 + 3 * num_layers] if num_layers > 1 else None

        # Define the padded time tail of seq_scr so the next layer's last-chunk
        # gate GEMM never reads uninitialized VMEM (results are never consumed).
        if num_layers > 1 and Tp > T:
            seq_scr[pl.ds(T, Tp - T)] = jnp.zeros((Tp - T, Bt, Hp), seq_scr.dtype)

        h_last = None
        for layer in range(num_layers):              # static (trace-time) layer loop
            wih = layer_refs[3 * layer][...]         # (I or Hp, Hp) — hoisted
            whh = layer_refs[3 * layer + 1][...]     # (Hp, Hp)      — hoisted
            bias = layer_refs[3 * layer + 2][...]    # (1, Hp) f32   — combined bias
            write_seq = layer != num_layers - 1      # last layer only needs h_T
            in_dim = wih.shape[0]

            # (1) Input-side pre-activations, one TC-timestep chunk per MXU GEMM,
            #     bias folded in — hoisted off the serial recurrence.
            def gate_chunk(c, slot, wih=wih, bias=bias, layer=layer, in_dim=in_dim):
                if layer == 0:
                    inp = x_ref[pl.ds(c * TC, TC)].reshape(TC * Bt, in_dim)
                else:
                    inp = seq_scr[pl.ds(c * TC, TC)].reshape(TC * Bt, in_dim)
                g = jnp.dot(inp, wih, preferred_element_type=jnp.float32) + bias
                gates_scr[pl.ds(slot * TC, TC)] = g.reshape(TC, Bt, Hp)

            gate_chunk(0, 0)
            h = jnp.zeros((Bt, Hp), carry_dtype)     # PyTorch h0 = zeros
            for c in range(n_chunks):                # static chunk loop
                slot = c % n_slots
                # Issue chunk c+1's gate GEMM before consuming chunk c's gates.
                if c + 1 < n_chunks:
                    gate_chunk(c + 1, (c + 1) % n_slots)

                steps = min(TC, T - c * TC)          # last chunk may be partial
                gbase = slot * TC
                sbase = c * TC

                # (2) Serial recurrence: only gate[t] + h @ W_hh + tanh on the
                #     chain; h carried in compute_dtype (single cast after tanh).
                def step(t, h, whh=whh, gbase=gbase, sbase=sbase,
                         write_seq=write_seq):
                    pre = gates_scr[gbase + t] + jnp.dot(
                        h, whh, preferred_element_type=jnp.float32)
                    h_new = jnp.tanh(pre).astype(carry_dtype)
                    if write_seq:
                        seq_scr[sbase + t] = h_new
                    return h_new

                h = lax.fori_loop(0, steps, step, h,
                                  unroll=min(base_unroll, steps))
            h_last = h

        # (3) Fused final Linear on the last timestep.  Output padded to 128
        #     lanes so the store is a dense, unmasked vst.
        out_ref[...] = (
            jnp.dot(h_last, fc_w_ref[...], preferred_element_type=jnp.float32)
            + fc_b_ref[...]
        ).astype(out_ref.dtype)

    return kernel


# ---------------------------------------------------------------------------
# Wrapper (padding, generation-aware batch chunking, VMEM budgeting)
# ---------------------------------------------------------------------------
def rnn_forward(x, params, *, compute_dtype=jnp.float32):
    """x: (batch, seq, input_size) -> (batch, 1); matches the PyTorch module."""
    B, T, I = x.shape
    layers = params["layers"]
    L = len(layers)
    H = layers[0][1].shape[0]
    cdt = jnp.dtype(compute_dtype)

    # Hidden padded to a lane multiple; timesteps chunked for the gate GEMM.
    Hp = _round_up(H, 128)
    TC = min(T, 32)
    Tp = _round_up(T, TC)
    n_chunks = Tp // TC
    n_slots = 2 if n_chunks > 1 else 1

    vmem_cap = _tpu_vmem_capacity_bytes()
    kind = _device_kind()
    # v6e: single TC, 256-wide MXU, 128 MiB VMEM -> Bt up to 256; else 128.
    bt_cap = 256 if ("v6" in kind and vmem_cap >= 100 * 2**20) else 128

    if B < 16:
        Bt = _round_up(B, 8)
    else:
        # >= 2 batch chunks so both TensorCores get work on v7x (free on 1-TC
        # chips: constant-index weights are not re-fetched across grid steps).
        Bt = min(bt_cap, _round_up((B + 1) // 2, 8))

    I_lane = _round_up(I, 128)           # lane padding of the x block in VMEM
    weight_bytes = 0
    for layer, _ in enumerate(layers):
        in_pad = _round_up(I if layer == 0 else Hp, 8)
        weight_bytes += (in_pad * Hp + Hp * Hp) * cdt.itemsize + Hp * 4
    weight_bytes += Hp * 128 * cdt.itemsize + 128 * 4

    def footprint(bt):
        fb = 2 * Tp * bt * I_lane * cdt.itemsize     # x block (double-buffered)
        fb += 2 * weight_bytes                       # weights (double-buffered)
        fb += 2 * bt * 128 * 4                       # output block
        fb += n_slots * TC * bt * Hp * 4             # gate-chunk scratch
        fb += TC * bt * Hp * 4                       # transient GEMM result
        if L > 1:
            fb += Tp * bt * Hp * cdt.itemsize        # hidden-sequence scratch
        return fb

    budget = max(vmem_cap - 8 * 2**20, 16 * 2**20)   # leave Mosaic headroom
    while footprint(Bt) > budget and Bt > 8:
        Bt = max(8, _round_up(Bt // 2, 8))

    Bp = _round_up(B, Bt)
    nb = Bp // Bt
    vmem_limit = int(min(max(footprint(Bt) + 4 * 2**20, 16 * 2**20), budget))

    # Time-major + time/batch pad + cast on x only (one small fused XLA pass).
    x_tm = jnp.transpose(x, (1, 0, 2)).astype(cdt)
    x_tm = jnp.pad(x_tm, ((0, Tp - T), (0, Bp - B), (0, 0)))

    flat_inputs = [x_tm]
    in_specs = [pl.BlockSpec((Tp, Bt, I), lambda ib: (0, ib, 0))]
    for layer, (wih, whh, b) in enumerate(layers):
        in_sz = wih.shape[0]
        in_pad = in_sz if layer == 0 else Hp
        wih_p = jnp.zeros((in_pad, Hp), cdt).at[:in_sz, :H].set(wih.astype(cdt))
        whh_p = jnp.zeros((Hp, Hp), cdt).at[:H, :H].set(whh.astype(cdt))
        b_p = jnp.zeros((1, Hp), jnp.float32).at[:, :H].set(b.astype(jnp.float32))
        flat_inputs += [wih_p, whh_p, b_p]
        in_specs += [
            pl.BlockSpec((in_pad, Hp), lambda ib: (0, 0)),
            pl.BlockSpec((Hp, Hp), lambda ib: (0, 0)),
            pl.BlockSpec((1, Hp), lambda ib: (0, 0)),
        ]
    fc_w_p = jnp.zeros((Hp, 128), cdt).at[:H, :1].set(params["fc_w"].astype(cdt))
    fc_b_p = jnp.zeros((1, 128), jnp.float32).at[:, :1].set(
        params["fc_b"].astype(jnp.float32))
    flat_inputs += [fc_w_p, fc_b_p]
    in_specs += [
        pl.BlockSpec((Hp, 128), lambda ib: (0, 0)),
        pl.BlockSpec((1, 128), lambda ib: (0, 0)),
    ]

    out_spec = pl.BlockSpec((Bt, 128), lambda ib: (ib, 0))

    scratch_shapes = [pltpu.VMEM((n_slots * TC, Bt, Hp), jnp.float32)]  # gates
    if L > 1:
        scratch_shapes.append(pltpu.VMEM((Tp, Bt, Hp), cdt))            # hidden seq

    kernel = _make_fused_rnn_kernel(L, T, Tp, TC, n_slots, Bt, Hp, cdt)
    out = pl.pallas_call(
        kernel,
        out_shape=jax.ShapeDtypeStruct((Bp, 128), jnp.float32),
        grid=(nb,),
        in_specs=in_specs,
        out_specs=out_spec,
        scratch_shapes=scratch_shapes,
        compiler_params=pltpu.CompilerParams(
            dimension_semantics=("parallel",),
            vmem_limit_bytes=vmem_limit,
        ),
    )(*flat_inputs)
    return out[:B, :1]


# ---------------------------------------------------------------------------
# Deterministic parameter init (same shapes / init range as nn.RNN + nn.Linear)
# ---------------------------------------------------------------------------
def init_params(key, input_size, hidden_size, num_layers):
    bound = 1.0 / float(np.sqrt(hidden_size))
    layers = []
    for layer in range(num_layers):
        in_sz = input_size if layer == 0 else hidden_size
        key, k1, k2, k3, k4 = jax.random.split(key, 5)
        wih = jax.random.uniform(k1, (in_sz, hidden_size), jnp.float32, -bound, bound)
        whh = jax.random.uniform(k2, (hidden_size, hidden_size), jnp.float32, -bound, bound)
        bih = jax.random.uniform(k3, (1, hidden_size), jnp.float32, -bound, bound)
        bhh = jax.random.uniform(k4, (1, hidden_size), jnp.float32, -bound, bound)
        layers.append((wih, whh, bih + bhh))
    key, k1, k2 = jax.random.split(key, 3)
    fc_w = jax.random.uniform(k1, (hidden_size, 1), jnp.float32, -bound, bound)
    fc_b = jax.random.uniform(k2, (1, 1), jnp.float32, -bound, bound)
    return {"layers": layers, "fc_w": fc_w, "fc_b": fc_b}


# ---------------------------------------------------------------------------
# Pure-JAX reference (silent correctness check)
# ---------------------------------------------------------------------------
def rnn_forward_ref(x, params):
    h_seq = x.astype(jnp.float32)                  # (B, T, C)
    B = x.shape[0]
    for (wih, whh, b) in params["layers"]:
        H = whh.shape[0]
        h = jnp.zeros((B, H), jnp.float32)
        outs = []
        for t in range(h_seq.shape[1]):
            h = jnp.tanh(h_seq[:, t, :] @ wih + h @ whh + b)
            outs.append(h)
        h_seq = jnp.stack(outs, axis=1)
    return h_seq[:, -1, :] @ params["fc_w"] + params["fc_b"]


if __name__ == "__main__":
    batch, seq, input_size, hidden_size, num_layers = 2, 8, 4, 32, 2

    key = jax.random.PRNGKey(0)
    key, xkey = jax.random.split(key)
    x = jax.random.normal(xkey, (batch, seq, input_size), dtype=jnp.float32)
    params = init_params(key, input_size, hidden_size, num_layers)

    out = rnn_forward(x, params)
    out = jax.block_until_ready(out)

    ref = rnn_forward_ref(x, params)
    np.testing.assert_allclose(np.asarray(out), np.asarray(ref), atol=1e-4, rtol=1e-4)

    print("KERNEL_OK")
</pallas_src>

<mosaic_0001>
module attributes {stable_mosaic.version = 11 : i64} {
  func.func @kernel(%arg0: i32, %arg1: memref<8x8x4xf32, #tpu.memory_space<vmem>>, %arg2: memref<4x128xf32, #tpu.memory_space<vmem>>, %arg3: memref<128x128xf32, #tpu.memory_space<vmem>>, %arg4: memref<1x128xf32, #tpu.memory_space<vmem>>, %arg5: memref<128x128xf32, #tpu.memory_space<vmem>>, %arg6: memref<128x128xf32, #tpu.memory_space<vmem>>, %arg7: memref<1x128xf32, #tpu.memory_space<vmem>>, %arg8: memref<128x128xf32, #tpu.memory_space<vmem>>, %arg9: memref<1x128xf32, #tpu.memory_space<vmem>>, %arg10: memref<8x128xf32, #tpu.memory_space<vmem>>, %arg11: memref<8x8x128xf32, #tpu.memory_space<vmem>>, %arg12: memref<8x8x128xf32, #tpu.memory_space<vmem>>) attributes {dimension_semantics = [#tpu.dimension_semantics<parallel>], iteration_bounds = array<i64: 1>, scalar_prefetch = 0 : i64, scratch_operands = 2 : i64, tpu.core_type = #tpu.core_type<tc>, window_params = [{transform_indices = @transform_0, window_bounds = array<i64: 8, 8, 4>}, {pipeline_mode = #tpu.pipeline_mode<synchronous>, transform_indices = @transform_1, window_bounds = array<i64: 4, 128>}, {pipeline_mode = #tpu.pipeline_mode<synchronous>, transform_indices = @transform_2, window_bounds = array<i64: 128, 128>}, {pipeline_mode = #tpu.pipeline_mode<synchronous>, transform_indices = @transform_3, window_bounds = array<i64: 1, 128>}, {pipeline_mode = #tpu.pipeline_mode<synchronous>, transform_indices = @transform_4, window_bounds = array<i64: 128, 128>}, {pipeline_mode = #tpu.pipeline_mode<synchronous>, transform_indices = @transform_5, window_bounds = array<i64: 128, 128>}, {pipeline_mode = #tpu.pipeline_mode<synchronous>, transform_indices = @transform_6, window_bounds = array<i64: 1, 128>}, {pipeline_mode = #tpu.pipeline_mode<synchronous>, transform_indices = @transform_7, window_bounds = array<i64: 128, 128>}, {pipeline_mode = #tpu.pipeline_mode<synchronous>, transform_indices = @transform_8, window_bounds = array<i64: 1, 128>}, {transform_indices = @transform_9, window_bounds = array<i64: 8, 128>}]} {
    %c0 = arith.constant 0 : index
    %c0_0 = arith.constant 0 : index
    %0 = vector.load %arg2[%c0, %c0_0] : memref<4x128xf32, #tpu.memory_space<vmem>>, vector<4x128xf32>
    %c0_1 = arith.constant 0 : index
    %c0_2 = arith.constant 0 : index
    %1 = vector.load %arg3[%c0_1, %c0_2] : memref<128x128xf32, #tpu.memory_space<vmem>>, vector<128x128xf32>
    %c0_3 = arith.constant 0 : index
    %c0_4 = arith.constant 0 : index
    %2 = vector.load %arg4[%c0_3, %c0_4] : memref<1x128xf32, #tpu.memory_space<vmem>>, vector<1x128xf32>
    %c0_5 = arith.constant 0 : index
    %c0_6 = arith.constant 0 : index
    %c0_7 = arith.constant 0 : index
    %3 = vector.load %arg1[%c0_5, %c0_6, %c0_7] : memref<8x8x4xf32, #tpu.memory_space<vmem>>, vector<8x8x4xf32>
    %4 = vector.shape_cast %3 : vector<8x8x4xf32> to vector<64x4xf32>
    %cst = arith.constant dense<0.000000e+00> : vector<64x128xf32>
    %5 = tpu.matmul %4, %0, %cst {dimension_numbers = #tpu.dot_dimension_numbers<[1], [0], [0], [1], [0, 0, 1, 1], [], []>} : vector<64x4xf32>, vector<4x128xf32>, vector<64x128xf32> -> vector<64x128xf32>
    %6 = vector.broadcast %2 : vector<1x128xf32> to vector<64x128xf32>
    %7 = arith.addf %5, %6 : vector<64x128xf32>
    %8 = vector.shape_cast %7 : vector<64x128xf32> to vector<8x8x128xf32>
    %c0_8 = arith.constant 0 : index
    %c0_9 = arith.constant 0 : index
    %c0_10 = arith.constant 0 : index
    %9 = vector.load %arg11[%c0_8, %c0_9, %c0_10] : memref<8x8x128xf32, #tpu.memory_space<vmem>>, vector<8x8x128xf32>
    tpu.vector_store %arg11[%c0_8, %c0_9, %c0_10], %8 {strides = array<i32>} : memref<8x8x128xf32, #tpu.memory_space<vmem>>, vector<8x8x128xf32>,
    %cst_11 = arith.constant 0.000000e+00 : f32
    %10 = vector.broadcast %cst_11 : f32 to vector<8x128xf32>
    %c0_i32 = arith.constant 0 : i32
    %c0_i32_12 = arith.constant 0 : i32
    %11 = arith.addi %c0_i32_12, %c0_i32 : i32
    %12 = arith.index_cast %11 : i32 to index
    %c0_13 = arith.constant 0 : index
    %c0_14 = arith.constant 0 : index
    %13 = vector.load %arg11[%12, %c0_13, %c0_14] : memref<8x8x128xf32, #tpu.memory_space<vmem>>, vector<1x8x128xf32>
    %14 = vector.shape_cast %13 : vector<1x8x128xf32> to vector<8x128xf32>
    %cst_15 = arith.constant dense<0.000000e+00> : vector<8x128xf32>
    %15 = tpu.matmul %10, %1, %cst_15 {dimension_numbers = #tpu.dot_dimension_numbers<[1], [0], [0], [1], [0, 0, 1, 1], [], []>} : vector<8x128xf32>, vector<128x128xf32>, vector<8x128xf32> -> vector<8x128xf32>
    %16 = arith.addf %14, %15 : vector<8x128xf32>
    %17 = math.tanh %16 : vector<8x128xf32>
    %c0_i32_16 = arith.constant 0 : i32
    %18 = arith.addi %c0_i32_16, %c0_i32 : i32
    %19 = arith.index_cast %18 : i32 to index
    %c0_17 = arith.constant 0 : index
    %c0_18 = arith.constant 0 : index
    %20 = vector.load %arg12[%19, %c0_17, %c0_18] : memref<8x8x128xf32, #tpu.memory_space<vmem>>, vector<1x8x128xf32>
    %21 = vector.shape_cast %20 : vector<1x8x128xf32> to vector<8x128xf32>
    %22 = vector.shape_cast %17 : vector<8x128xf32> to vector<1x8x128xf32>
    tpu.vector_store %arg12[%19, %c0_17, %c0_18], %22 {strides = array<i32>} : memref<8x8x128xf32, #tpu.memory_space<vmem>>, vector<1x8x128xf32>,
    %c1_i32 = arith.constant 1 : i32
    %c0_i32_19 = arith.constant 0 : i32
    %23 = arith.addi %c0_i32_19, %c1_i32 : i32
    %24 = arith.index_cast %23 : i32 to index
    %c0_20 = arith.constant 0 : index
    %c0_21 = arith.constant 0 : index
    %25 = vector.load %arg11[%24, %c0_20, %c0_21] : memref<8x8x128xf32, #tpu.memory_space<vmem>>, vector<1x8x128xf32>
    %26 = vector.shape_cast %25 : vector<1x8x128xf32> to vector<8x128xf32>
    %cst_22 = arith.constant dense<0.000000e+00> : vector<8x128xf32>
    %27 = tpu.matmul %17, %1, %cst_22 {dimension_numbers = #tpu.dot_dimension_numbers<[1], [0], [0], [1], [0, 0, 1, 1], [], []>} : vector<8x128xf32>, vector<128x128xf32>, vector<8x128xf32> -> vector<8x128xf32>
    %28 = arith.addf %26, %27 : vector<8x128xf32>
    %29 = math.tanh %28 : vector<8x128xf32>
    %c0_i32_23 = arith.constant 0 : i32
    %30 = arith.addi %c0_i32_23, %c1_i32 : i32
    %31 = arith.index_cast %30 : i32 to index
    %c0_24 = arith.constant 0 : index
    %c0_25 = arith.constant 0 : index
    %32 = vector.load %arg12[%31, %c0_24, %c0_25] : memref<8x8x128xf32, #tpu.memory_space<vmem>>, vector<1x8x128xf32>
    %33 = vector.shape_cast %32 : vector<1x8x128xf32> to vector<8x128xf32>
    %34 = vector.shape_cast %29 : vector<8x128xf32> to vector<1x8x128xf32>
    tpu.vector_store %arg12[%31, %c0_24, %c0_25], %34 {strides = array<i32>} : memref<8x8x128xf32, #tpu.memory_space<vmem>>, vector<1x8x128xf32>,
    %c2_i32 = arith.constant 2 : i32
    %c0_i32_26 = arith.constant 0 : i32
    %35 = arith.addi %c0_i32_26, %c2_i32 : i32
    %36 = arith.index_cast %35 : i32 to index
    %c0_27 = arith.constant 0 : index
    %c0_28 = arith.constant 0 : index
    %37 = vector.load %arg11[%36, %c0_27, %c0_28] : memref<8x8x128xf32, #tpu.memory_space<vmem>>, vector<1x8x128xf32>
    %38 = vector.shape_cast %37 : vector<1x8x128xf32> to vector<8x128xf32>
    %cst_29 = arith.constant dense<0.000000e+00> : vector<8x128xf32>
    %39 = tpu.matmul %29, %1, %cst_29 {dimension_numbers = #tpu.dot_dimension_numbers<[1], [0], [0], [1], [0, 0, 1, 1], [], []>} : vector<8x128xf32>, vector<128x128xf32>, vector<8x128xf32> -> vector<8x128xf32>
    %40 = arith.addf %38, %39 : vector<8x128xf32>
    %41 = math.tanh %40 : vector<8x128xf32>
    %c0_i32_30 = arith.constant 0 : i32
    %42 = arith.addi %c0_i32_30, %c2_i32 : i32
    %43 = arith.index_cast %42 : i32 to index
    %c0_31 = arith.constant 0 : index
    %c0_32 = arith.constant 0 : index
    %44 = vector.load %arg12[%43, %c0_31, %c0_32] : memref<8x8x128xf32, #tpu.memory_space<vmem>>, vector<1x8x128xf32>
    %45 = vector.shape_cast %44 : vector<1x8x128xf32> to vector<8x128xf32>
    %46 = vector.shape_cast %41 : vector<8x128xf32> to vector<1x8x128xf32>
    tpu.vector_store %arg12[%43, %c0_31, %c0_32], %46 {strides = array<i32>} : memref<8x8x128xf32, #tpu.memory_space<vmem>>, vector<1x8x128xf32>,
    %c3_i32 = arith.constant 3 : i32
    %c0_i32_33 = arith.constant 0 : i32
    %47 = arith.addi %c0_i32_33, %c3_i32 : i32
    %48 = arith.index_cast %47 : i32 to index
    %c0_34 = arith.constant 0 : index
    %c0_35 = arith.constant 0 : index
    %49 = vector.load %arg11[%48, %c0_34, %c0_35] : memref<8x8x128xf32, #tpu.memory_space<vmem>>, vector<1x8x128xf32>
    %50 = vector.shape_cast %49 : vector<1x8x128xf32> to vector<8x128xf32>
    %cst_36 = arith.constant dense<0.000000e+00> : vector<8x128xf32>
    %51 = tpu.matmul %41, %1, %cst_36 {dimension_numbers = #tpu.dot_dimension_numbers<[1], [0], [0], [1], [0, 0, 1, 1], [], []>} : vector<8x128xf32>, vector<128x128xf32>, vector<8x128xf32> -> vector<8x128xf32>
    %52 = arith.addf %50, %51 : vector<8x128xf32>
    %53 = math.tanh %52 : vector<8x128xf32>
    %c0_i32_37 = arith.constant 0 : i32
    %54 = arith.addi %c0_i32_37, %c3_i32 : i32
    %55 = arith.index_cast %54 : i32 to index
    %c0_38 = arith.constant 0 : index
    %c0_39 = arith.constant 0 : index
    %56 = vector.load %arg12[%55, %c0_38, %c0_39] : memref<8x8x128xf32, #tpu.memory_space<vmem>>, vector<1x8x128xf32>
    %57 = vector.shape_cast %56 : vector<1x8x128xf32> to vector<8x128xf32>
    %58 = vector.shape_cast %53 : vector<8x128xf32> to vector<1x8x128xf32>
    tpu.vector_store %arg12[%55, %c0_38, %c0_39], %58 {strides = array<i32>} : memref<8x8x128xf32, #tpu.memory_space<vmem>>, vector<1x8x128xf32>,
    %c4_i32 = arith.constant 4 : i32
    %c0_i32_40 = arith.constant 0 : i32
    %59 = arith.addi %c0_i32_40, %c4_i32 : i32
    %60 = arith.index_cast %59 : i32 to index
    %c0_41 = arith.constant 0 : index
    %c0_42 = arith.constant 0 : index
    %61 = vector.load %arg11[%60, %c0_41, %c0_42] : memref<8x8x128xf32, #tpu.memory_space<vmem>>, vector<1x8x128xf32>
    %62 = vector.shape_cast %61 : vector<1x8x128xf32> to vector<8x128xf32>
    %cst_43 = arith.constant dense<0.000000e+00> : vector<8x128xf32>
    %63 = tpu.matmul %53, %1, %cst_43 {dimension_numbers = #tpu.dot_dimension_numbers<[1], [0], [0], [1], [0, 0, 1, 1], [], []>} : vector<8x128xf32>, vector<128x128xf32>, vector<8x128xf32> -> vector<8x128xf32>
    %64 = arith.addf %62, %63 : vector<8x128xf32>
    %65 = math.tanh %64 : vector<8x128xf32>
    %c0_i32_44 = arith.constant 0 : i32
    %66 = arith.addi %c0_i32_44, %c4_i32 : i32
    %67 = arith.index_cast %66 : i32 to index
    %c0_45 = arith.constant 0 : index
    %c0_46 = arith.constant 0 : index
    %68 = vector.load %arg12[%67, %c0_45, %c0_46] : memref<8x8x128xf32, #tpu.memory_space<vmem>>, vector<1x8x128xf32>
    %69 = vector.shape_cast %68 : vector<1x8x128xf32> to vector<8x128xf32>
    %70 = vector.shape_cast %65 : vector<8x128xf32> to vector<1x8x128xf32>
    tpu.vector_store %arg12[%67, %c0_45, %c0_46], %70 {strides = array<i32>} : memref<8x8x128xf32, #tpu.memory_space<vmem>>, vector<1x8x128xf32>,
    %c5_i32 = arith.constant 5 : i32
    %c0_i32_47 = arith.constant 0 : i32
    %71 = arith.addi %c0_i32_47, %c5_i32 : i32
    %72 = arith.index_cast %71 : i32 to index
    %c0_48 = arith.constant 0 : index
    %c0_49 = arith.constant 0 : index
    %73 = vector.load %arg11[%72, %c0_48, %c0_49] : memref<8x8x128xf32, #tpu.memory_space<vmem>>, vector<1x8x128xf32>
    %74 = vector.shape_cast %73 : vector<1x8x128xf32> to vector<8x128xf32>
    %cst_50 = arith.constant dense<0.000000e+00> : vector<8x128xf32>
    %75 = tpu.matmul %65, %1, %cst_50 {dimension_numbers = #tpu.dot_dimension_numbers<[1], [0], [0], [1], [0, 0, 1, 1], [], []>} : vector<8x128xf32>, vector<128x128xf32>, vector<8x128xf32> -> vector<8x128xf32>
    %76 = arith.addf %74, %75 : vector<8x128xf32>
    %77 = math.tanh %76 : vector<8x128xf32>
    %c0_i32_51 = arith.constant 0 : i32
    %78 = arith.addi %c0_i32_51, %c5_i32 : i32
    %79 = arith.index_cast %78 : i32 to index
    %c0_52 = arith.constant 0 : index
    %c0_53 = arith.constant 0 : index
    %80 = vector.load %arg12[%79, %c0_52, %c0_53] : memref<8x8x128xf32, #tpu.memory_space<vmem>>, vector<1x8x128xf32>
    %81 = vector.shape_cast %80 : vector<1x8x128xf32> to vector<8x128xf32>
    %82 = vector.shape_cast %77 : vector<8x128xf32> to vector<1x8x128xf32>
    tpu.vector_store %arg12[%79, %c0_52, %c0_53], %82 {strides = array<i32>} : memref<8x8x128xf32, #tpu.memory_space<vmem>>, vector<1x8x128xf32>,
    %c6_i32 = arith.constant 6 : i32
    %c0_i32_54 = arith.constant 0 : i32
    %83 = arith.addi %c0_i32_54, %c6_i32 : i32
    %84 = arith.index_cast %83 : i32 to index
    %c0_55 = arith.constant 0 : index
    %c0_56 = arith.constant 0 : index
    %85 = vector.load %arg11[%84, %c0_55, %c0_56] : memref<8x8x128xf32, #tpu.memory_space<vmem>>, vector<1x8x128xf32>
    %86 = vector.shape_cast %85 : vector<1x8x128xf32> to vector<8x128xf32>
    %cst_57 = arith.constant dense<0.000000e+00> : vector<8x128xf32>
    %87 = tpu.matmul %77, %1, %cst_57 {dimension_numbers = #tpu.dot_dimension_numbers<[1], [0], [0], [1], [0, 0, 1, 1], [], []>} : vector<8x128xf32>, vector<128x128xf32>, vector<8x128xf32> -> vector<8x128xf32>
    %88 = arith.addf %86, %87 : vector<8x128xf32>
    %89 = math.tanh %88 : vector<8x128xf32>
    %c0_i32_58 = arith.constant 0 : i32
    %90 = arith.addi %c0_i32_58, %c6_i32 : i32
    %91 = arith.index_cast %90 : i32 to index
    %c0_59 = arith.constant 0 : index
    %c0_60 = arith.constant 0 : index
    %92 = vector.load %arg12[%91, %c0_59, %c0_60] : memref<8x8x128xf32, #tpu.memory_space<vmem>>, vector<1x8x128xf32>
    %93 = vector.shape_cast %92 : vector<1x8x128xf32> to vector<8x128xf32>
    %94 = vector.shape_cast %89 : vector<8x128xf32> to vector<1x8x128xf32>
    tpu.vector_store %arg12[%91, %c0_59, %c0_60], %94 {strides = array<i32>} : memref<8x8x128xf32, #tpu.memory_space<vmem>>, vector<1x8x128xf32>,
    %c7_i32 = arith.constant 7 : i32
    %c0_i32_61 = arith.constant 0 : i32
    %95 = arith.addi %c0_i32_61, %c7_i32 : i32
    %96 = arith.index_cast %95 : i32 to index
    %c0_62 = arith.constant 0 : index
    %c0_63 = arith.constant 0 : index
    %97 = vector.load %arg11[%96, %c0_62, %c0_63] : memref<8x8x128xf32, #tpu.memory_space<vmem>>, vector<1x8x128xf32>
    %98 = vector.shape_cast %97 : vector<1x8x128xf32> to vector<8x128xf32>
    %cst_64 = arith.constant dense<0.000000e+00> : vector<8x128xf32>
    %99 = tpu.matmul %89, %1, %cst_64 {dimension_numbers = #tpu.dot_dimension_numbers<[1], [0], [0], [1], [0, 0, 1, 1], [], []>} : vector<8x128xf32>, vector<128x128xf32>, vector<8x128xf32> -> vector<8x128xf32>
    %100 = arith.addf %98, %99 : vector<8x128xf32>
    %101 = math.tanh %100 : vector<8x128xf32>
    %c0_i32_65 = arith.constant 0 : i32
    %102 = arith.addi %c0_i32_65, %c7_i32 : i32
    %103 = arith.index_cast %102 : i32 to index
    %c0_66 = arith.constant 0 : index
    %c0_67 = arith.constant 0 : index
    %104 = vector.load %arg12[%103, %c0_66, %c0_67] : memref<8x8x128xf32, #tpu.memory_space<vmem>>, vector<1x8x128xf32>
    %105 = vector.shape_cast %104 : vector<1x8x128xf32> to vector<8x128xf32>
    %106 = vector.shape_cast %101 : vector<8x128xf32> to vector<1x8x128xf32>
    tpu.vector_store %arg12[%103, %c0_66, %c0_67], %106 {strides = array<i32>} : memref<8x8x128xf32, #tpu.memory_space<vmem>>, vector<1x8x128xf32>,
    %c8_i32 = arith.constant 8 : i32
    %c0_68 = arith.constant 0 : index
    %c0_69 = arith.constant 0 : index
    %107 = vector.load %arg5[%c0_68, %c0_69] : memref<128x128xf32, #tpu.memory_space<vmem>>, vector<128x128xf32>
    %c0_70 = arith.constant 0 : index
    %c0_71 = arith.constant 0 : index
    %108 = vector.load %arg6[%c0_70, %c0_71] : memref<128x128xf32, #tpu.memory_space<vmem>>, vector<128x128xf32>
    %c0_72 = arith.constant 0 : index
    %c0_73 = arith.constant 0 : index
    %109 = vector.load %arg7[%c0_72, %c0_73] : memref<1x128xf32, #tpu.memory_space<vmem>>, vector<1x128xf32>
    %c0_74 = arith.constant 0 : index
    %c0_75 = arith.constant 0 : index
    %c0_76 = arith.constant 0 : index
    %110 = vector.load %arg12[%c0_74, %c0_75, %c0_76] : memref<8x8x128xf32, #tpu.memory_space<vmem>>, vector<8x8x128xf32>
    %111 = vector.shape_cast %110 : vector<8x8x128xf32> to vector<64x128xf32>
    %cst_77 = arith.constant dense<0.000000e+00> : vector<64x128xf32>
    %112 = tpu.matmul %111, %107, %cst_77 {dimension_numbers = #tpu.dot_dimension_numbers<[1], [0], [0], [1], [0, 0, 1, 1], [], []>} : vector<64x128xf32>, vector<128x128xf32>, vector<64x128xf32> -> vector<64x128xf32>
    %113 = vector.broadcast %109 : vector<1x128xf32> to vector<64x128xf32>
    %114 = arith.addf %112, %113 : vector<64x128xf32>
    %115 = vector.shape_cast %114 : vector<64x128xf32> to vector<8x8x128xf32>
    %c0_78 = arith.constant 0 : index
    %c0_79 = arith.constant 0 : index
    %c0_80 = arith.constant 0 : index
    %116 = vector.load %arg11[%c0_78, %c0_79, %c0_80] : memref<8x8x128xf32, #tpu.memory_space<vmem>>, vector<8x8x128xf32>
    tpu.vector_store %arg11[%c0_78, %c0_79, %c0_80], %115 {strides = array<i32>} : memref<8x8x128xf32, #tpu.memory_space<vmem>>, vector<8x8x128xf32>,
    %cst_81 = arith.constant 0.000000e+00 : f32
    %117 = vector.broadcast %cst_81 : f32 to vector<8x128xf32>
    %c0_i32_82 = arith.constant 0 : i32
    %c0_i32_83 = arith.constant 0 : i32
    %118 = arith.addi %c0_i32_83, %c0_i32_82 : i32
    %119 = arith.index_cast %118 : i32 to index
    %c0_84 = arith.constant 0 : index
    %c0_85 = arith.constant 0 : index
    %120 = vector.load %arg11[%119, %c0_84, %c0_85] : memref<8x8x128xf32, #tpu.memory_space<vmem>>, vector<1x8x128xf32>
    %121 = vector.shape_cast %120 : vector<1x8x128xf32> to vector<8x128xf32>
    %cst_86 = arith.constant dense<0.000000e+00> : vector<8x128xf32>
    %122 = tpu.matmul %117, %108, %cst_86 {dimension_numbers = #tpu.dot_dimension_numbers<[1], [0], [0], [1], [0, 0, 1, 1], [], []>} : vector<8x128xf32>, vector<128x128xf32>, vector<8x128xf32> -> vector<8x128xf32>
    %123 = arith.addf %121, %122 : vector<8x128xf32>
    %124 = math.tanh %123 : vector<8x128xf32>
    %c1_i32_87 = arith.constant 1 : i32
    %c0_i32_88 = arith.constant 0 : i32
    %125 = arith.addi %c0_i32_88, %c1_i32_87 : i32
    %126 = arith.index_cast %125 : i32 to index
    %c0_89 = arith.constant 0 : index
    %c0_90 = arith.constant 0 : index
    %127 = vector.load %arg11[%126, %c0_89, %c0_90] : memref<8x8x128xf32, #tpu.memory_space<vmem>>, vector<1x8x128xf32>
    %128 = vector.shape_cast %127 : vector<1x8x128xf32> to vector<8x128xf32>
    %cst_91 = arith.constant dense<0.000000e+00> : vector<8x128xf32>
    %129 = tpu.matmul %124, %108, %cst_91 {dimension_numbers = #tpu.dot_dimension_numbers<[1], [0], [0], [1], [0, 0, 1, 1], [], []>} : vector<8x128xf32>, vector<128x128xf32>, vector<8x128xf32> -> vector<8x128xf32>
    %130 = arith.addf %128, %129 : vector<8x128xf32>
    %131 = math.tanh %130 : vector<8x128xf32>
    %c2_i32_92 = arith.constant 2 : i32
    %c0_i32_93 = arith.constant 0 : i32
    %132 = arith.addi %c0_i32_93, %c2_i32_92 : i32
    %133 = arith.index_cast %132 : i32 to index
    %c0_94 = arith.constant 0 : index
    %c0_95 = arith.constant 0 : index
    %134 = vector.load %arg11[%133, %c0_94, %c0_95] : memref<8x8x128xf32, #tpu.memory_space<vmem>>, vector<1x8x128xf32>
    %135 = vector.shape_cast %134 : vector<1x8x128xf32> to vector<8x128xf32>
    %cst_96 = arith.constant dense<0.000000e+00> : vector<8x128xf32>
    %136 = tpu.matmul %131, %108, %cst_96 {dimension_numbers = #tpu.dot_dimension_numbers<[1], [0], [0], [1], [0, 0, 1, 1], [], []>} : vector<8x128xf32>, vector<128x128xf32>, vector<8x128xf32> -> vector<8x128xf32>
    %137 = arith.addf %135, %136 : vector<8x128xf32>
    %138 = math.tanh %137 : vector<8x128xf32>
    %c3_i32_97 = arith.constant 3 : i32
    %c0_i32_98 = arith.constant 0 : i32
    %139 = arith.addi %c0_i32_98, %c3_i32_97 : i32
    %140 = arith.index_cast %139 : i32 to index
    %c0_99 = arith.constant 0 : index
    %c0_100 = arith.constant 0 : index
    %141 = vector.load %arg11[%140, %c0_99, %c0_100] : memref<8x8x128xf32, #tpu.memory_space<vmem>>, vector<1x8x128xf32>
    %142 = vector.shape_cast %141 : vector<1x8x128xf32> to vector<8x128xf32>
    %cst_101 = arith.constant dense<0.000000e+00> : vector<8x128xf32>
    %143 = tpu.matmul %138, %108, %cst_101 {dimension_numbers = #tpu.dot_dimension_numbers<[1], [0], [0], [1], [0, 0, 1, 1], [], []>} : vector<8x128xf32>, vector<128x128xf32>, vector<8x128xf32> -> vector<8x128xf32>
    %144 = arith.addf %142, %143 : vector<8x128xf32>
    %145 = math.tanh %144 : vector<8x128xf32>
    %c4_i32_102 = arith.constant 4 : i32
    %c0_i32_103 = arith.constant 0 : i32
    %146 = arith.addi %c0_i32_103, %c4_i32_102 : i32
    %147 = arith.index_cast %146 : i32 to index
    %c0_104 = arith.constant 0 : index
    %c0_105 = arith.constant 0 : index
    %148 = vector.load %arg11[%147, %c0_104, %c0_105] : memref<8x8x128xf32, #tpu.memory_space<vmem>>, vector<1x8x128xf32>
    %149 = vector.shape_cast %148 : vector<1x8x128xf32> to vector<8x128xf32>
    %cst_106 = arith.constant dense<0.000000e+00> : vector<8x128xf32>
    %150 = tpu.matmul %145, %108, %cst_106 {dimension_numbers = #tpu.dot_dimension_numbers<[1], [0], [0], [1], [0, 0, 1, 1], [], []>} : vector<8x128xf32>, vector<128x128xf32>, vector<8x128xf32> -> vector<8x128xf32>
    %151 = arith.addf %149, %150 : vector<8x128xf32>
    %152 = math.tanh %151 : vector<8x128xf32>
    %c5_i32_107 = arith.constant 5 : i32
    %c0_i32_108 = arith.constant 0 : i32
    %153 = arith.addi %c0_i32_108, %c5_i32_107 : i32
    %154 = arith.index_cast %153 : i32 to index
    %c0_109 = arith.constant 0 : index
    %c0_110 = arith.constant 0 : index
    %155 = vector.load %arg11[%154, %c0_109, %c0_110] : memref<8x8x128xf32, #tpu.memory_space<vmem>>, vector<1x8x128xf32>
    %156 = vector.shape_cast %155 : vector<1x8x128xf32> to vector<8x128xf32>
    %cst_111 = arith.constant dense<0.000000e+00> : vector<8x128xf32>
    %157 = tpu.matmul %152, %108, %cst_111 {dimension_numbers = #tpu.dot_dimension_numbers<[1], [0], [0], [1], [0, 0, 1, 1], [], []>} : vector<8x128xf32>, vector<128x128xf32>, vector<8x128xf32> -> vector<8x128xf32>
    %158 = arith.addf %156, %157 : vector<8x128xf32>
    %159 = math.tanh %158 : vector<8x128xf32>
    %c6_i32_112 = arith.constant 6 : i32
    %c0_i32_113 = arith.constant 0 : i32
    %160 = arith.addi %c0_i32_113, %c6_i32_112 : i32
    %161 = arith.index_cast %160 : i32 to index
    %c0_114 = arith.constant 0 : index
    %c0_115 = arith.constant 0 : index
    %162 = vector.load %arg11[%161, %c0_114, %c0_115] : memref<8x8x128xf32, #tpu.memory_space<vmem>>, vector<1x8x128xf32>
    %163 = vector.shape_cast %162 : vector<1x8x128xf32> to vector<8x128xf32>
    %cst_116 = arith.constant dense<0.000000e+00> : vector<8x128xf32>
    %164 = tpu.matmul %159, %108, %cst_116 {dimension_numbers = #tpu.dot_dimension_numbers<[1], [0], [0], [1], [0, 0, 1, 1], [], []>} : vector<8x128xf32>, vector<128x128xf32>, vector<8x128xf32> -> vector<8x128xf32>
    %165 = arith.addf %163, %164 : vector<8x128xf32>
    %166 = math.tanh %165 : vector<8x128xf32>
    %c7_i32_117 = arith.constant 7 : i32
    %c0_i32_118 = arith.constant 0 : i32
    %167 = arith.addi %c0_i32_118, %c7_i32_117 : i32
    %168 = arith.index_cast %167 : i32 to index
    %c0_119 = arith.constant 0 : index
    %c0_120 = arith.constant 0 : index
    %169 = vector.load %arg11[%168, %c0_119, %c0_120] : memref<8x8x128xf32, #tpu.memory_space<vmem>>, vector<1x8x128xf32>
    %170 = vector.shape_cast %169 : vector<1x8x128xf32> to vector<8x128xf32>
    %cst_121 = arith.constant dense<0.000000e+00> : vector<8x128xf32>
    %171 = tpu.matmul %166, %108, %cst_121 {dimension_numbers = #tpu.dot_dimension_numbers<[1], [0], [0], [1], [0, 0, 1, 1], [], []>} : vector<8x128xf32>, vector<128x128xf32>, vector<8x128xf32> -> vector<8x128xf32>
    %172 = arith.addf %170, %171 : vector<8x128xf32>
    %173 = math.tanh %172 : vector<8x128xf32>
    %c8_i32_122 = arith.constant 8 : i32
    %c0_123 = arith.constant 0 : index
    %c0_124 = arith.constant 0 : index
    %174 = vector.load %arg8[%c0_123, %c0_124] : memref<128x128xf32, #tpu.memory_space<vmem>>, vector<128x128xf32>
    %cst_125 = arith.constant dense<0.000000e+00> : vector<8x128xf32>
    %175 = tpu.matmul %173, %174, %cst_125 {dimension_numbers = #tpu.dot_dimension_numbers<[1], [0], [0], [1], [0, 0, 1, 1], [], []>} : vector<8x128xf32>, vector<128x128xf32>, vector<8x128xf32> -> vector<8x128xf32>
    %c0_126 = arith.constant 0 : index
    %c0_127 = arith.constant 0 : index
    %176 = vector.load %arg9[%c0_126, %c0_127] : memref<1x128xf32, #tpu.memory_space<vmem>>, vector<1x128xf32>
    %177 = vector.broadcast %176 : vector<1x128xf32> to vector<8x128xf32>
    %178 = arith.addf %175, %177 : vector<8x128xf32>
    %c0_128 = arith.constant 0 : index
    %c0_129 = arith.constant 0 : index
    %179 = vector.load %arg10[%c0_128, %c0_129] : memref<8x128xf32, #tpu.memory_space<vmem>>, vector<8x128xf32>
    tpu.vector_store %arg10[%c0_128, %c0_129], %178 {strides = array<i32>} : memref<8x128xf32, #tpu.memory_space<vmem>>, vector<8x128xf32>,
    return
  }
  func.func @transform_0(%arg0: i32) -> (i32, i32, i32) {
    %c0_i32 = arith.constant 0 : i32
    %c0_i32_0 = arith.constant 0 : i32
    %c0_i32_1 = arith.constant 0 : i32
    return %c0_i32, %arg0, %c0_i32_0 : i32, i32, i32
  }
  func.func @transform_1(%arg0: i32) -> (i32, i32) {
    %c0_i32 = arith.constant 0 : i32
    %c0_i32_0 = arith.constant 0 : i32
    %c0_i32_1 = arith.constant 0 : i32
    return %c0_i32, %c0_i32_0 : i32, i32
  }
  func.func @transform_2(%arg0: i32) -> (i32, i32) {
    %c0_i32 = arith.constant 0 : i32
    %c0_i32_0 = arith.constant 0 : i32
    %c0_i32_1 = arith.constant 0 : i32
    return %c0_i32, %c0_i32_0 : i32, i32
  }
  func.func @transform_3(%arg0: i32) -> (i32, i32) {
    %c0_i32 = arith.constant 0 : i32
    %c0_i32_0 = arith.constant 0 : i32
    %c0_i32_1 = arith.constant 0 : i32
    return %c0_i32, %c0_i32_0 : i32, i32
  }
  func.func @transform_4(%arg0: i32) -> (i32, i32) {
    %c0_i32 = arith.constant 0 : i32
    %c0_i32_0 = arith.constant 0 : i32
    %c0_i32_1 = arith.constant 0 : i32
    return %c0_i32, %c0_i32_0 : i32, i32
  }
  func.func @transform_5(%arg0: i32) -> (i32, i32) {
    %c0_i32 = arith.constant 0 : i32
    %c0_i32_0 = arith.constant 0 : i32
    %c0_i32_1 = arith.constant 0 : i32
    return %c0_i32, %c0_i32_0 : i32, i32
  }
  func.func @transform_6(%arg0: i32) -> (i32, i32) {
    %c0_i32 = arith.constant 0 : i32
    %c0_i32_0 = arith.constant 0 : i32
    %c0_i32_1 = arith.constant 0 : i32
    return %c0_i32, %c0_i32_0 : i32, i32
  }
  func.func @transform_7(%arg0: i32) -> (i32, i32) {
    %c0_i32 = arith.constant 0 : i32
    %c0_i32_0 = arith.constant 0 : i32
    %c0_i32_1 = arith.constant 0 : i32
    return %c0_i32, %c0_i32_0 : i32, i32
  }
  func.func @transform_8(%arg0: i32) -> (i32, i32) {
    %c0_i32 = arith.constant 0 : i32
    %c0_i32_0 = arith.constant 0 : i32
    %c0_i32_1 = arith.constant 0 : i32
    return %c0_i32, %c0_i32_0 : i32, i32
  }
  func.func @transform_9(%arg0: i32) -> (i32, i32) {
    %c0_i32 = arith.constant 0 : i32
    %c0_i32_0 = arith.constant 0 : i32
    return %arg0, %c0_i32 : i32, i32
  }
}

</mosaic_0001>

<llo_original>
// kernel: tpu_custom_call.1
$region0: #{tpu_custom_call.1}
  #allocation0 [shape = 'u32[]', space=smem, size = 0x4, offset = 0x4, fixed_abs, tag = 'smem constant byte address 0x4 - core index']
  #allocation1 [shape = 'u32[144,128]{1,0:T(1,128)}', space=vmem, size = 0x12000, scoped, tag = 'internal scratch']
  #allocation2 [shape = 'f32[8,8,128]{2,1,0:T(8,128)}', space=vmem, size = 0x8000, scoped, tag = 'scratch operand']
  #allocation3 [shape = 'f32[8,8,128]{2,1,0:T(8,128)}', space=vmem, size = 0x8000, scoped, tag = 'scratch operand']
  %s0 = inlined_call_operand.vmem [shape: f32[8,8,4], index: 0, kind: input, shape index: {}]
  %s1 = inlined_call_operand.vmem [shape: f32[4,128], index: 1, kind: input, shape index: {}]
  %s2 = inlined_call_operand.hbm [shape: f32[128,128], index: 2, kind: input, shape index: {}]
  %s3 = inlined_call_operand.vmem [shape: f32[1,128], index: 3, kind: input, shape index: {}]
  %s4 = inlined_call_operand.hbm [shape: f32[128,128], index: 4, kind: input, shape index: {}]
  %s5 = inlined_call_operand.hbm [shape: f32[128,128], index: 5, kind: input, shape index: {}]
  %s6 = inlined_call_operand.vmem [shape: f32[1,128], index: 6, kind: input, shape index: {}]
  %s7 = inlined_call_operand.hbm [shape: f32[128,128], index: 7, kind: input, shape index: {}]
  %s8 = inlined_call_operand.vmem [shape: f32[1,128], index: 8, kind: input, shape index: {}]
  %s9 = inlined_call_operand.hbm [shape: f32[8,128], index: 9, kind: output, shape index: {}]
  %s10 = sld [smem:[#allocation0]]
  $region62: #{tpu_custom_call.1} parent=0
    _
  %s12 = ssub.s32 1, %s10
  %s13 = scalar_select 0, %s12, %s10
  $region1: #{tpu_custom_call.1} parent=0
    #allocation4 [shape = 'u8[65536]{0}', space=vmem, size = 0x10000, scoped, tag = 'input window, operand 2, single buffered']
    #allocation5 [shape = 's32[1]{0}', space=sflag, size = 0x4, scoped, tag = 'scoped memory for tpu_custom_call.1']
    #allocation6 [shape = 's32[1]{0}', space=sflag, size = 0x4, scoped, tag = 'scoped memory for tpu_custom_call.1']
    #allocation7 [shape = 'u8[65536]{0}', space=vmem, size = 0x10000, scoped, tag = 'input window, operand 4, single buffered']
    #allocation8 [shape = 's32[1]{0}', space=sflag, size = 0x4, scoped, tag = 'scoped memory for tpu_custom_call.1']
    #allocation9 [shape = 'u8[65536]{0}', space=vmem, size = 0x10000, scoped, tag = 'input window, operand 5, single buffered']
    #allocation10 [shape = 'u8[65536]{0}', space=vmem, size = 0x10000, scoped, tag = 'input window, operand 7, single buffered']
    #allocation11 [shape = 's32[1]{0}', space=sflag, size = 0x4, scoped, tag = 'scoped memory for tpu_custom_call.1']
    #allocation12 [shape = 'u8[4096]{0}', space=vmem, size = 0x1000, scoped, tag = 'output window, operand 0, single buffered']
    %14 = vsyncpa [#allocation5], 0
    %15 = vsyncpa [#allocation8], 0
    %16 = vsyncpa [#allocation11], 0
    %17 = vsyncpa [#allocation6], 0
    // Predicated region
    $region2: #{tpu_custom_call.1} parent=1 // pred_check
      _
    $region3: #{tpu_custom_call.1} parent=1 // pred_check_branch
      %19 = sbr.rel (0) target = $region5
    $region4: #{tpu_custom_call.1} parent=1 // pred_region
      _
    $region5: #{tpu_custom_call.1} parent=1 // pred_fallthru
      _
    // Predicated region
    $region6: #{tpu_custom_call.1} parent=1 // pred_check
      _
    $region7: #{tpu_custom_call.1} parent=1 // pred_check_branch
      %21 = sbr.rel (0) target = $region9
    $region8: #{tpu_custom_call.1} parent=1 // pred_region
      _
    $region9: #{tpu_custom_call.1} parent=1 // pred_fallthru
      _
    // Predicated region
    $region10: #{tpu_custom_call.1} parent=1 // pred_check
      _
    $region11: #{tpu_custom_call.1} parent=1 // pred_check_branch
      %23 = sbr.rel (0) target = $region13
    $region12: #{tpu_custom_call.1} parent=1 // pred_region
      %s25 = ssub.s32 2048, 2048
      %26 = vsyncadd [#allocation5], %s25
      %s27 = sshll.u32 [#allocation4], 4
      %s28 = int_to_ptr.vmem [resolvable:$true] %s27
      %33 = dma.hbm_to_vmem [thread:$0]  %s2, 2048, %s28, [#allocation5], 128, 128, 8
    $region13: #{tpu_custom_call.1} parent=1 // pred_fallthru
      _
    // Predicated region
    $region14: #{tpu_custom_call.1} parent=1 // pred_check
      _
    $region15: #{tpu_custom_call.1} parent=1 // pred_check_branch
      %35 = sbr.rel (0) target = $region17
    $region16: #{tpu_custom_call.1} parent=1 // pred_region
      _
    $region17: #{tpu_custom_call.1} parent=1 // pred_fallthru
      _
    // Predicated region
    $region18: #{tpu_custom_call.1} parent=1 // pred_check
      _
    $region19: #{tpu_custom_call.1} parent=1 // pred_check_branch
      %37 = sbr.rel (0) target = $region21
    $region20: #{tpu_custom_call.1} parent=1 // pred_region
      %s39 = ssub.s32 2048, 2048
      %40 = vsyncadd [#allocation8], %s39
      %s41 = sshll.u32 [#allocation7], 4
      %s42 = int_to_ptr.vmem [resolvable:$true] %s41
      %47 = dma.hbm_to_vmem [thread:$0]  %s4, 2048, %s42, [#allocation8], 128, 128, 8
    $region21: #{tpu_custom_call.1} parent=1 // pred_fallthru
      _
    // Predicated region
    $region22: #{tpu_custom_call.1} parent=1 // pred_check
      _
    $region23: #{tpu_custom_call.1} parent=1 // pred_check_branch
      %49 = sbr.rel (0) target = $region25
    $region24: #{tpu_custom_call.1} parent=1 // pred_region
      %s51 = ssub.s32 2048, 2048
      %52 = vsyncadd [#allocation8], %s51
      %s53 = sshll.u32 [#allocation9], 4
      %s54 = int_to_ptr.vmem [resolvable:$true] %s53
      %59 = dma.hbm_to_vmem [thread:$0]  %s5, 2048, %s54, [#allocation8], 128, 128, 8
    $region25: #{tpu_custom_call.1} parent=1 // pred_fallthru
      _
    // Predicated region
    $region26: #{tpu_custom_call.1} parent=1 // pred_check
      _
    $region27: #{tpu_custom_call.1} parent=1 // pred_check_branch
      %61 = sbr.rel (0) target = $region29
    $region28: #{tpu_custom_call.1} parent=1 // pred_region
      _
    $region29: #{tpu_custom_call.1} parent=1 // pred_fallthru
      _
    // Predicated region
    $region30: #{tpu_custom_call.1} parent=1 // pred_check
      _
    $region31: #{tpu_custom_call.1} parent=1 // pred_check_branch
      %63 = sbr.rel (0) target = $region33
    $region32: #{tpu_custom_call.1} parent=1 // pred_region
      %s65 = ssub.s32 2048, 2048
      %66 = vsyncadd [#allocation11], %s65
      %s67 = sshll.u32 [#allocation10], 4
      %s68 = int_to_ptr.vmem [resolvable:$true] %s67
      %73 = dma.hbm_to_vmem [thread:$0]  %s7, 2048, %s68, [#allocation11], 128, 128, 8
    $region33: #{tpu_custom_call.1} parent=1 // pred_fallthru
      _
    // Predicated region
    $region34: #{tpu_custom_call.1} parent=1 // pred_check
      _
    $region35: #{tpu_custom_call.1} parent=1 // pred_check_branch
      %75 = sbr.rel (0) target = $region37
    $region36: #{tpu_custom_call.1} parent=1 // pred_region
      _
    $region37: #{tpu_custom_call.1} parent=1 // pred_fallthru
      _
    // Predicated region
    $region38: #{tpu_custom_call.1} parent=1 // pred_check
      _
    $region39: #{tpu_custom_call.1} parent=1 // pred_check_branch
      %77 = sbr.rel (0) target = $region41
    $region40: #{tpu_custom_call.1} parent=1 // pred_region
      %78 = dma.done [#allocation5], 2048
    $region41: #{tpu_custom_call.1} parent=1 // pred_fallthru
      _
    // Predicated region
    $region42: #{tpu_custom_call.1} parent=1 // pred_check
      _
    $region43: #{tpu_custom_call.1} parent=1 // pred_check_branch
      %80 = sbr.rel (0) target = $region45
    $region44: #{tpu_custom_call.1} parent=1 // pred_region
      %81 = dma.done [#allocation8], 2048
    $region45: #{tpu_custom_call.1} parent=1 // pred_fallthru
      _
    // Predicated region
    $region46: #{tpu_custom_call.1} parent=1 // pred_check
      _
    $region47: #{tpu_custom_call.1} parent=1 // pred_check_branch
      %83 = sbr.rel (0) target = $region49
    $region48: #{tpu_custom_call.1} parent=1 // pred_region
      %84 = dma.done [#allocation8], 2048
    $region49: #{tpu_custom_call.1} parent=1 // pred_fallthru
      _
    // Predicated region
    $region50: #{tpu_custom_call.1} parent=1 // pred_check
      _
    $region51: #{tpu_custom_call.1} parent=1 // pred_check_branch
      %86 = sbr.rel (0) target = $region53
    $region52: #{tpu_custom_call.1} parent=1 // pred_region
      %87 = dma.done [#allocation11], 2048
    $region53: #{tpu_custom_call.1} parent=1 // pred_fallthru
      _
    %v88 = vld [vmem:[%s1] sm:$0xf]
    %v89 = vld [vmem:[#allocation4] sm:$0xff]
    %v90 = vld [vmem:[#allocation4 + $0x8] sm:$0xff]
    %v91 = vld [vmem:[#allocation4 + $0x10] sm:$0xff]
    %v92 = vld [vmem:[#allocation4 + $0x18] sm:$0xff]
    %v93 = vld [vmem:[#allocation4 + $0x20] sm:$0xff]
    %v94 = vld [vmem:[#allocation4 + $0x28] sm:$0xff]
    %v95 = vld [vmem:[#allocation4 + $0x30] sm:$0xff]
    %v96 = vld [vmem:[#allocation4 + $0x38] sm:$0xff]
    %v97 = vld [vmem:[#allocation4 + $0x40] sm:$0xff]
    %v98 = vld [vmem:[#allocation4 + $0x48] sm:$0xff]
    %v99 = vld [vmem:[#allocation4 + $0x50] sm:$0xff]
    %v100 = vld [vmem:[#allocation4 + $0x58] sm:$0xff]
    %v101 = vld [vmem:[#allocation4 + $0x60] sm:$0xff]
    %v102 = vld [vmem:[#allocation4 + $0x68] sm:$0xff]
    %v103 = vld [vmem:[#allocation4 + $0x70] sm:$0xff]
    %v104 = vld [vmem:[#allocation4 + $0x78] sm:$0xff]
    %v105 = vld [vmem:[%s3] sm:$0x1]
    %v106 = vld [vmem:[%s0] sm:$0xff]
    %v107 = vld [vmem:[%s0 + $0x8] sm:$0xff]
    %v108 = vld [vmem:[%s0 + $0x10] sm:$0xff]
    %v109 = vld [vmem:[%s0 + $0x18] sm:$0xff]
    %v110 = vld [vmem:[%s0 + $0x20] sm:$0xff]
    %v111 = vld [vmem:[%s0 + $0x28] sm:$0xff]
    %v112 = vld [vmem:[%s0 + $0x30] sm:$0xff]
    %v113 = vld [vmem:[%s0 + $0x38] sm:$0xff]
    %v115 = vlaneseq
    %v116 = vshrl.u32 %v115, 7
    %v117 = vsub.s32 0, %v116
    %v118 = vrot.slane %v105, %v117
    %vm120 = vcmask 31744
    %v122 = vsel %vm120, %v106, 0
    %v125 = vsel %vm120, %v107, 0
    %v128 = vsel %vm120, %v108, 0
    %v131 = vsel %vm120, %v109, 0
    %v134 = vsel %vm120, %v110, 0
    %v137 = vsel %vm120, %v111, 0
    %v140 = vsel %vm120, %v112, 0
    %v143 = vsel %vm120, %v113, 0
    %vm145 = vcmask 1043456
    %v147 = vsel %vm145, %v88, 0
    %149 = vmatprep.subr.mxu0 0.0
    %150 = vmatpush1.msra.mxu0 0.0
    %151 = vmatprep.subr.mxu0 0.0
    %152 = vmatpush1.msra.mxu0 0.0
    %153 = vmatprep.subr.mxu0 0.0
    %154 = vmatpush1.msra.mxu0 0.0
    %155 = vmatprep.subr.mxu0 0.0
    %156 = vmatpush1.msra.mxu0 0.0
    %157 = vmatprep.subr.mxu0 0.0
    %158 = vmatpush1.msra.mxu0 0.0
    %159 = vmatprep.subr.mxu0 0.0
    %160 = vmatpush1.msra.mxu0 0.0
    %161 = vmatprep.subr.mxu0 0.0
    %162 = vmatpush1.msra.mxu0 0.0
    %163 = vmatprep.subr.mxu0 0.0
    %164 = vmatpush1.msra.mxu0 0.0
    %165 = vmatprep.subr.mxu0 0.0
    %166 = vmatpush1.msra.mxu0 0.0
    %167 = vmatprep.subr.mxu0 0.0
    %168 = vmatpush1.msra.mxu0 0.0
    %169 = vmatprep.subr.mxu0 0.0
    %170 = vmatpush1.msra.mxu0 0.0
    %171 = vmatprep.subr.mxu0 0.0
    %172 = vmatpush1.msra.mxu0 0.0
    %173 = vmatprep.subr.mxu0 0.0
    %174 = vmatpush1.msra.mxu0 0.0
    %175 = vmatprep.subr.mxu0 0.0
    %176 = vmatpush1.msra.mxu0 0.0
    %177 = vmatprep.subr.mxu0 0.0
    %178 = vmatpush1.msra.mxu0 0.0
    %179 = vmatprep.subr.mxu0 0.0
    %180 = vmatpush1.msra.mxu0 %v147
    %181 = vmatprep.subr.mxu0 0.0
    %182 = vmatpush2.msra.mxu0 0.0
    %183 = vmatprep.subr.mxu0 0.0
    %184 = vmatpush2.msra.mxu0 0.0
    %185 = vmatprep.subr.mxu0 0.0
    %186 = vmatpush2.msra.mxu0 0.0
    %187 = vmatprep.subr.mxu0 0.0
    %188 = vmatpush2.msra.mxu0 0.0
    %189 = vmatprep.subr.mxu0 0.0
    %190 = vmatpush2.msra.mxu0 0.0
    %191 = vmatprep.subr.mxu0 0.0
    %192 = vmatpush2.msra.mxu0 0.0
    %193 = vmatprep.subr.mxu0 0.0
    %194 = vmatpush2.msra.mxu0 0.0
    %195 = vmatprep.subr.mxu0 0.0
    %196 = vmatpush2.msra.mxu0 0.0
    %197 = vmatprep.subr.mxu0 0.0
    %198 = vmatpush2.msra.mxu0 0.0
    %199 = vmatprep.subr.mxu0 0.0
    %200 = vmatpush2.msra.mxu0 0.0
    %201 = vmatprep.subr.mxu0 0.0
    %202 = vmatpush2.msra.mxu0 0.0
    %203 = vmatprep.subr.mxu0 0.0
    %204 = vmatpush2.msra.mxu0 0.0
    %205 = vmatprep.subr.mxu0 0.0
    %206 = vmatpush2.msra.mxu0 0.0
    %207 = vmatprep.subr.mxu0 0.0
    %208 = vmatpush2.msra.mxu0 0.0
    %209 = vmatprep.subr.mxu0 0.0
    %210 = vmatpush2.msra.mxu0 0.0
    %211 = vmatprep.subr.mxu0 0.0
    %212 = vmatpush2.msra.mxu0 0.0
    %213 = vmatprep.mubr.f32.mxu0 0.0
    %214 = vmatmul.mubr.f32.gmra.mxu0 %v122
    %v215 = vpop.f32.mrf.mxu0
    %v216 = vadd.f32 %v118, %v215
    %v217 = vpop.f32.mrf.mxu0
    %218 = vmatprep.mubr.f32.mxu0 0.0
    %219 = vmatmul.mubr.f32.gmra.mxu0 %v125
    %v220 = vpop.f32.mrf.mxu0
    %v221 = vadd.f32 %v118, %v220
    %v222 = vpop.f32.mrf.mxu0
    %223 = vmatprep.mubr.f32.mxu0 0.0
    %224 = vmatmul.mubr.f32.gmra.mxu0 %v128
    %v225 = vpop.f32.mrf.mxu0
    %v226 = vadd.f32 %v118, %v225
    %v227 = vpop.f32.mrf.mxu0
    %228 = vmatprep.mubr.f32.mxu0 0.0
    %229 = vmatmul.mubr.f32.gmra.mxu0 %v131
    %v230 = vpop.f32.mrf.mxu0
    %v231 = vadd.f32 %v118, %v230
    %v232 = vpop.f32.mrf.mxu0
    %233 = vmatprep.mubr.f32.mxu0 0.0
    %234 = vmatmul.mubr.f32.gmra.mxu0 %v134
    %v235 = vpop.f32.mrf.mxu0
    %v236 = vadd.f32 %v118, %v235
    %v237 = vpop.f32.mrf.mxu0
    %238 = vmatprep.mubr.f32.mxu0 0.0
    %239 = vmatmul.mubr.f32.gmra.mxu0 %v137
    %v240 = vpop.f32.mrf.mxu0
    %v241 = vadd.f32 %v118, %v240
    %v242 = vpop.f32.mrf.mxu0
    %243 = vmatprep.mubr.f32.mxu0 0.0
    %244 = vmatmul.mubr.f32.gmra.mxu0 %v140
    %v245 = vpop.f32.mrf.mxu0
    %v246 = vadd.f32 %v118, %v245
    %v247 = vpop.f32.mrf.mxu0
    %248 = vmatprep.mubr.f32.mxu0 0.0
    %249 = vmatmul.mubr.f32.gmra.mxu0 %v143
    %v250 = vpop.f32.mrf.mxu0
    %v251 = vadd.f32 %v118, %v250
    %v252 = vpop.f32.mrf.mxu0
    %253 = vdwg.mxu0
    %254 = vst [vmem:[#allocation2] sm:$0xff] %v216
    %255 = vst [vmem:[#allocation2 + $0x8] sm:$0xff] %v221
    %256 = vst [vmem:[#allocation2 + $0x10] sm:$0xff] %v226
    %257 = vst [vmem:[#allocation2 + $0x18] sm:$0xff] %v231
    %258 = vst [vmem:[#allocation2 + $0x20] sm:$0xff] %v236
    %259 = vst [vmem:[#allocation2 + $0x28] sm:$0xff] %v241
    %260 = vst [vmem:[#allocation2 + $0x30] sm:$0xff] %v246
    %261 = vst [vmem:[#allocation2 + $0x38] sm:$0xff] %v251
    %v262 = vld [vmem:[#allocation2] sm:$0xff]
    %263 = vmatprep.subr.mxu0 0.0
    %264 = vmatpush1.msra.mxu0 %v104
    %265 = vmatprep.subr.mxu0 0.0
    %266 = vmatpush1.msra.mxu0 %v103
    %267 = vmatprep.subr.mxu0 0.0
    %268 = vmatpush1.msra.mxu0 %v102
    %269 = vmatprep.subr.mxu0 0.0
    %270 = vmatpush1.msra.mxu0 %v101
    %271 = vmatprep.subr.mxu0 0.0
    %272 = vmatpush1.msra.mxu0 %v100
    %273 = vmatprep.subr.mxu0 0.0
    %274 = vmatpush1.msra.mxu0 %v99
    %275 = vmatprep.subr.mxu0 0.0
    %276 = vmatpush1.msra.mxu0 %v98
    %277 = vmatprep.subr.mxu0 0.0
    %278 = vmatpush1.msra.mxu0 %v97
    %279 = vmatprep.subr.mxu0 0.0
    %280 = vmatpush1.msra.mxu0 %v96
    %281 = vmatprep.subr.mxu0 0.0
    %282 = vmatpush1.msra.mxu0 %v95
    %283 = vmatprep.subr.mxu0 0.0
    %284 = vmatpush1.msra.mxu0 %v94
    %285 = vmatprep.subr.mxu0 0.0
    %286 = vmatpush1.msra.mxu0 %v93
    %287 = vmatprep.subr.mxu0 0.0
    %288 = vmatpush1.msra.mxu0 %v92
    %289 = vmatprep.subr.mxu0 0.0
    %290 = vmatpush1.msra.mxu0 %v91
    %291 = vmatprep.subr.mxu0 0.0
    %292 = vmatpush1.msra.mxu0 %v90
    %293 = vmatprep.subr.mxu0 0.0
    %294 = vmatpush1.msra.mxu0 %v89
    %295 = vmatprep.subr.mxu0 0.0
    %296 = vmatpush2.msra.mxu0 0.0
    %297 = vmatprep.subr.mxu0 0.0
    %298 = vmatpush2.msra.mxu0 0.0
    %299 = vmatprep.subr.mxu0 0.0
    %300 = vmatpush2.msra.mxu0 0.0
    %301 = vmatprep.subr.mxu0 0.0
    %302 = vmatpush2.msra.mxu0 0.0
    %303 = vmatprep.subr.mxu0 0.0
    %304 = vmatpush2.msra.mxu0 0.0
    %305 = vmatprep.subr.mxu0 0.0
    %306 = vmatpush2.msra.mxu0 0.0
    %307 = vmatprep.subr.mxu0 0.0
    %308 = vmatpush2.msra.mxu0 0.0
    %309 = vmatprep.subr.mxu0 0.0
    %310 = vmatpush2.msra.mxu0 0.0
    %311 = vmatprep.subr.mxu0 0.0
    %312 = vmatpush2.msra.mxu0 0.0
    %313 = vmatprep.subr.mxu0 0.0
    %314 = vmatpush2.msra.mxu0 0.0
    %315 = vmatprep.subr.mxu0 0.0
    %316 = vmatpush2.msra.mxu0 0.0
    %317 = vmatprep.subr.mxu0 0.0
    %318 = vmatpush2.msra.mxu0 0.0
    %319 = vmatprep.subr.mxu0 0.0
    %320 = vmatpush2.msra.mxu0 0.0
    %321 = vmatprep.subr.mxu0 0.0
    %322 = vmatpush2.msra.mxu0 0.0
    %323 = vmatprep.subr.mxu0 0.0
    %324 = vmatpush2.msra.mxu0 0.0
    %325 = vmatprep.subr.mxu0 0.0
    %326 = vmatpush2.msra.mxu0 0.0
    %327 = vmatprep.mubr.f32.mxu0 0.0
    %328 = vmatmul.mubr.f32.gmra.mxu0 0.0
    %v329 = vpop.f32.mrf.mxu0
    %v330 = vadd.f32 0.0, %v329
    %v331 = vpop.f32.mrf.mxu0
    %332 = vdwg.mxu0
    %v333 = vadd.f32 %v262, %v330
    %v334 = vtanh.pop %v333
    %335 = vst [vmem:[#allocation3] sm:$0xff] %v334
    %s336 = scalar_lea.vmem [#allocation2], 8
    %v337 = vld [vmem:[%s336] sm:$0xff]
    %338 = vmatprep.subr.mxu0 0.0
    %339 = vmatpush1.msra.mxu0 %v104
    %340 = vmatprep.subr.mxu0 0.0
    %341 = vmatpush1.msra.mxu0 %v103
    %342 = vmatprep.subr.mxu0 0.0
    %343 = vmatpush1.msra.mxu0 %v102
    %344 = vmatprep.subr.mxu0 0.0
    %345 = vmatpush1.msra.mxu0 %v101
    %346 = vmatprep.subr.mxu0 0.0
    %347 = vmatpush1.msra.mxu0 %v100
    %348 = vmatprep.subr.mxu0 0.0
    %349 = vmatpush1.msra.mxu0 %v99
    %350 = vmatprep.subr.mxu0 0.0
    %351 = vmatpush1.msra.mxu0 %v98
    %352 = vmatprep.subr.mxu0 0.0
    %353 = vmatpush1.msra.mxu0 %v97
    %354 = vmatprep.subr.mxu0 0.0
    %355 = vmatpush1.msra.mxu0 %v96
    %356 = vmatprep.subr.mxu0 0.0
    %357 = vmatpush1.msra.mxu0 %v95
    %358 = vmatprep.subr.mxu0 0.0
    %359 = vmatpush1.msra.mxu0 %v94
    %360 = vmatprep.subr.mxu0 0.0
    %361 = vmatpush1.msra.mxu0 %v93
    %362 = vmatprep.subr.mxu0 0.0
    %363 = vmatpush1.msra.mxu0 %v92
    %364 = vmatprep.subr.mxu0 0.0
    %365 = vmatpush1.msra.mxu0 %v91
    %366 = vmatprep.subr.mxu0 0.0
    %367 = vmatpush1.msra.mxu0 %v90
    %368 = vmatprep.subr.mxu0 0.0
    %369 = vmatpush1.msra.mxu0 %v89
    %370 = vmatprep.subr.mxu0 0.0
    %371 = vmatpush2.msra.mxu0 0.0
    %372 = vmatprep.subr.mxu0 0.0
    %373 = vmatpush2.msra.mxu0 0.0
    %374 = vmatprep.subr.mxu0 0.0
    %375 = vmatpush2.msra.mxu0 0.0
    %376 = vmatprep.subr.mxu0 0.0
    %377 = vmatpush2.msra.mxu0 0.0
    %378 = vmatprep.subr.mxu0 0.0
    %379 = vmatpush2.msra.mxu0 0.0
    %380 = vmatprep.subr.mxu0 0.0
    %381 = vmatpush2.msra.mxu0 0.0
    %382 = vmatprep.subr.mxu0 0.0
    %383 = vmatpush2.msra.mxu0 0.0
    %384 = vmatprep.subr.mxu0 0.0
    %385 = vmatpush2.msra.mxu0 0.0
    %386 = vmatprep.subr.mxu0 0.0
    %387 = vmatpush2.msra.mxu0 0.0
    %388 = vmatprep.subr.mxu0 0.0
    %389 = vmatpush2.msra.mxu0 0.0
    %390 = vmatprep.subr.mxu0 0.0
    %391 = vmatpush2.msra.mxu0 0.0
    %392 = vmatprep.subr.mxu0 0.0
    %393 = vmatpush2.msra.mxu0 0.0
    %394 = vmatprep.subr.mxu0 0.0
    %395 = vmatpush2.msra.mxu0 0.0
    %396 = vmatprep.subr.mxu0 0.0
    %397 = vmatpush2.msra.mxu0 0.0
    %398 = vmatprep.subr.mxu0 0.0
    %399 = vmatpush2.msra.mxu0 0.0
    %400 = vmatprep.subr.mxu0 0.0
    %401 = vmatpush2.msra.mxu0 0.0
    %402 = vmatprep.mubr.f32.mxu0 0.0
    %403 = vmatmul.mubr.f32.gmra.mxu0 %v334
    %v404 = vpop.f32.mrf.mxu0
    %v405 = vadd.f32 0.0, %v404
    %v406 = vpop.f32.mrf.mxu0
    %407 = vdwg.mxu0
    %v408 = vadd.f32 %v337, %v405
    %v409 = vtanh.pop %v408
    %s410 = scalar_lea.vmem [#allocation3], 8
    %411 = vst [vmem:[%s410] sm:$0xff] %v409
    %s412 = scalar_lea.vmem [#allocation2], 16
    %v413 = vld [vmem:[%s412] sm:$0xff]
    %414 = vmatprep.subr.mxu0 0.0
    %415 = vmatpush1.msra.mxu0 %v104
    %416 = vmatprep.subr.mxu0 0.0
    %417 = vmatpush1.msra.mxu0 %v103
    %418 = vmatprep.subr.mxu0 0.0
    %419 = vmatpush1.msra.mxu0 %v102
    %420 = vmatprep.subr.mxu0 0.0
    %421 = vmatpush1.msra.mxu0 %v101
    %422 = vmatprep.subr.mxu0 0.0
    %423 = vmatpush1.msra.mxu0 %v100
    %424 = vmatprep.subr.mxu0 0.0
    %425 = vmatpush1.msra.mxu0 %v99
    %426 = vmatprep.subr.mxu0 0.0
    %427 = vmatpush1.msra.mxu0 %v98
    %428 = vmatprep.subr.mxu0 0.0
    %429 = vmatpush1.msra.mxu0 %v97
    %430 = vmatprep.subr.mxu0 0.0
    %431 = vmatpush1.msra.mxu0 %v96
    %432 = vmatprep.subr.mxu0 0.0
    %433 = vmatpush1.msra.mxu0 %v95
    %434 = vmatprep.subr.mxu0 0.0
    %435 = vmatpush1.msra.mxu0 %v94
    %436 = vmatprep.subr.mxu0 0.0
    %437 = vmatpush1.msra.mxu0 %v93
    %438 = vmatprep.subr.mxu0 0.0
    %439 = vmatpush1.msra.mxu0 %v92
    %440 = vmatprep.subr.mxu0 0.0
    %441 = vmatpush1.msra.mxu0 %v91
    %442 = vmatprep.subr.mxu0 0.0
    %443 = vmatpush1.msra.mxu0 %v90
    %444 = vmatprep.subr.mxu0 0.0
    %445 = vmatpush1.msra.mxu0 %v89
    %446 = vmatprep.subr.mxu0 0.0
    %447 = vmatpush2.msra.mxu0 0.0
    %448 = vmatprep.subr.mxu0 0.0
    %449 = vmatpush2.msra.mxu0 0.0
    %450 = vmatprep.subr.mxu0 0.0
    %451 = vmatpush2.msra.mxu0 0.0
    %452 = vmatprep.subr.mxu0 0.0
    %453 = vmatpush2.msra.mxu0 0.0
    %454 = vmatprep.subr.mxu0 0.0
    %455 = vmatpush2.msra.mxu0 0.0
    %456 = vmatprep.subr.mxu0 0.0
    %457 = vmatpush2.msra.mxu0 0.0
    %458 = vmatprep.subr.mxu0 0.0
    %459 = vmatpush2.msra.mxu0 0.0
    %460 = vmatprep.subr.mxu0 0.0
    %461 = vmatpush2.msra.mxu0 0.0
    %462 = vmatprep.subr.mxu0 0.0
    %463 = vmatpush2.msra.mxu0 0.0
    %464 = vmatprep.subr.mxu0 0.0
    %465 = vmatpush2.msra.mxu0 0.0
    %466 = vmatprep.subr.mxu0 0.0
    %467 = vmatpush2.msra.mxu0 0.0
    %468 = vmatprep.subr.mxu0 0.0
    %469 = vmatpush2.msra.mxu0 0.0
    %470 = vmatprep.subr.mxu0 0.0
    %471 = vmatpush2.msra.mxu0 0.0
    %472 = vmatprep.subr.mxu0 0.0
    %473 = vmatpush2.msra.mxu0 0.0
    %474 = vmatprep.subr.mxu0 0.0
    %475 = vmatpush2.msra.mxu0 0.0
    %476 = vmatprep.subr.mxu0 0.0
    %477 = vmatpush2.msra.mxu0 0.0
    %478 = vmatprep.mubr.f32.mxu0 0.0
    %479 = vmatmul.mubr.f32.gmra.mxu0 %v409
    %v480 = vpop.f32.mrf.mxu0
    %v481 = vadd.f32 0.0, %v480
    %v482 = vpop.f32.mrf.mxu0
    %483 = vdwg.mxu0
    %v484 = vadd.f32 %v413, %v481
    %v485 = vtanh.pop %v484
    %s486 = scalar_lea.vmem [#allocation3], 16
    %487 = vst [vmem:[%s486] sm:$0xff] %v485
    %s488 = scalar_lea.vmem [#allocation2], 24
    %v489 = vld [vmem:[%s488] sm:$0xff]
    %490 = vmatprep.subr.mxu0 0.0
    %491 = vmatpush1.msra.mxu0 %v104
    %492 = vmatprep.subr.mxu0 0.0
    %493 = vmatpush1.msra.mxu0 %v103
    %494 = vmatprep.subr.mxu0 0.0
    %495 = vmatpush1.msra.mxu0 %v102
    %496 = vmatprep.subr.mxu0 0.0
    %497 = vmatpush1.msra.mxu0 %v101
    %498 = vmatprep.subr.mxu0 0.0
    %499 = vmatpush1.msra.mxu0 %v100
    %500 = vmatprep.subr.mxu0 0.0
    %501 = vmatpush1.msra.mxu0 %v99
    %502 = vmatprep.subr.mxu0 0.0
    %503 = vmatpush1.msra.mxu0 %v98
    %504 = vmatprep.subr.mxu0 0.0
    %505 = vmatpush1.msra.mxu0 %v97
    %506 = vmatprep.subr.mxu0 0.0
    %507 = vmatpush1.msra.mxu0 %v96
    %508 = vmatprep.subr.mxu0 0.0
    %509 = vmatpush1.msra.mxu0 %v95
    %510 = vmatprep.subr.mxu0 0.0
    %511 = vmatpush1.msra.mxu0 %v94
    %512 = vmatprep.subr.mxu0 0.0
    %513 = vmatpush1.msra.mxu0 %v93
    %514 = vmatprep.subr.mxu0 0.0
    %515 = vmatpush1.msra.mxu0 %v92
    %516 = vmatprep.subr.mxu0 0.0
    %517 = vmatpush1.msra.mxu0 %v91
    %518 = vmatprep.subr.mxu0 0.0
    %519 = vmatpush1.msra.mxu0 %v90
    %520 = vmatprep.subr.mxu0 0.0
    %521 = vmatpush1.msra.mxu0 %v89
    %522 = vmatprep.subr.mxu0 0.0
    %523 = vmatpush2.msra.mxu0 0.0
    %524 = vmatprep.subr.mxu0 0.0
    %525 = vmatpush2.msra.mxu0 0.0
    %526 = vmatprep.subr.mxu0 0.0
    %527 = vmatpush2.msra.mxu0 0.0
    %528 = vmatprep.subr.mxu0 0.0
    %529 = vmatpush2.msra.mxu0 0.0
    %530 = vmatprep.subr.mxu0 0.0
    %531 = vmatpush2.msra.mxu0 0.0
    %532 = vmatprep.subr.mxu0 0.0
    %533 = vmatpush2.msra.mxu0 0.0
    %534 = vmatprep.subr.mxu0 0.0
    %535 = vmatpush2.msra.mxu0 0.0
    %536 = vmatprep.subr.mxu0 0.0
    %537 = vmatpush2.msra.mxu0 0.0
    %538 = vmatprep.subr.mxu0 0.0
    %539 = vmatpush2.msra.mxu0 0.0
    %540 = vmatprep.subr.mxu0 0.0
    %541 = vmatpush2.msra.mxu0 0.0
    %542 = vmatprep.subr.mxu0 0.0
    %543 = vmatpush2.msra.mxu0 0.0
    %544 = vmatprep.subr.mxu0 0.0
    %545 = vmatpush2.msra.mxu0 0.0
    %546 = vmatprep.subr.mxu0 0.0
    %547 = vmatpush2.msra.mxu0 0.0
    %548 = vmatprep.subr.mxu0 0.0
    %549 = vmatpush2.msra.mxu0 0.0
    %550 = vmatprep.subr.mxu0 0.0
    %551 = vmatpush2.msra.mxu0 0.0
    %552 = vmatprep.subr.mxu0 0.0
    %553 = vmatpush2.msra.mxu0 0.0
    %554 = vmatprep.mubr.f32.mxu0 0.0
    %555 = vmatmul.mubr.f32.gmra.mxu0 %v485
    %v556 = vpop.f32.mrf.mxu0
    %v557 = vadd.f32 0.0, %v556
    %v558 = vpop.f32.mrf.mxu0
    %559 = vdwg.mxu0
    %v560 = vadd.f32 %v489, %v557
    %v561 = vtanh.pop %v560
    %s562 = scalar_lea.vmem [#allocation3], 24
    %563 = vst [vmem:[%s562] sm:$0xff] %v561
    %s564 = scalar_lea.vmem [#allocation2], 32
    %v565 = vld [vmem:[%s564] sm:$0xff]
    %566 = vmatprep.subr.mxu0 0.0
    %567 = vmatpush1.msra.mxu0 %v104
    %568 = vmatprep.subr.mxu0 0.0
    %569 = vmatpush1.msra.mxu0 %v103
    %570 = vmatprep.subr.mxu0 0.0
    %571 = vmatpush1.msra.mxu0 %v102
    %572 = vmatprep.subr.mxu0 0.0
    %573 = vmatpush1.msra.mxu0 %v101
    %574 = vmatprep.subr.mxu0 0.0
    %575 = vmatpush1.msra.mxu0 %v100
    %576 = vmatprep.subr.mxu0 0.0
    %577 = vmatpush1.msra.mxu0 %v99
    %578 = vmatprep.subr.mxu0 0.0
    %579 = vmatpush1.msra.mxu0 %v98
    %580 = vmatprep.subr.mxu0 0.0
    %581 = vmatpush1.msra.mxu0 %v97
    %582 = vmatprep.subr.mxu0 0.0
    %583 = vmatpush1.msra.mxu0 %v96
    %584 = vmatprep.subr.mxu0 0.0
    %585 = vmatpush1.msra.mxu0 %v95
    %586 = vmatprep.subr.mxu0 0.0
    %587 = vmatpush1.msra.mxu0 %v94
    %588 = vmatprep.subr.mxu0 0.0
    %589 = vmatpush1.msra.mxu0 %v93
    %590 = vmatprep.subr.mxu0 0.0
    %591 = vmatpush1.msra.mxu0 %v92
    %592 = vmatprep.subr.mxu0 0.0
    %593 = vmatpush1.msra.mxu0 %v91
    %594 = vmatprep.subr.mxu0 0.0
    %595 = vmatpush1.msra.mxu0 %v90
    %596 = vmatprep.subr.mxu0 0.0
    %597 = vmatpush1.msra.mxu0 %v89
    %598 = vmatprep.subr.mxu0 0.0
    %599 = vmatpush2.msra.mxu0 0.0
    %600 = vmatprep.subr.mxu0 0.0
    %601 = vmatpush2.msra.mxu0 0.0
    %602 = vmatprep.subr.mxu0 0.0
    %603 = vmatpush2.msra.mxu0 0.0
    %604 = vmatprep.subr.mxu0 0.0
    %605 = vmatpush2.msra.mxu0 0.0
    %606 = vmatprep.subr.mxu0 0.0
    %607 = vmatpush2.msra.mxu0 0.0
    %608 = vmatprep.subr.mxu0 0.0
    %609 = vmatpush2.msra.mxu0 0.0
    %610 = vmatprep.subr.mxu0 0.0
    %611 = vmatpush2.msra.mxu0 0.0
    %612 = vmatprep.subr.mxu0 0.0
    %613 = vmatpush2.msra.mxu0 0.0
    %614 = vmatprep.subr.mxu0 0.0
    %615 = vmatpush2.msra.mxu0 0.0
    %616 = vmatprep.subr.mxu0 0.0
    %617 = vmatpush2.msra.mxu0 0.0
    %618 = vmatprep.subr.mxu0 0.0
    %619 = vmatpush2.msra.mxu0 0.0
    %620 = vmatprep.subr.mxu0 0.0
    %621 = vmatpush2.msra.mxu0 0.0
    %622 = vmatprep.subr.mxu0 0.0
    %623 = vmatpush2.msra.mxu0 0.0
    %624 = vmatprep.subr.mxu0 0.0
    %625 = vmatpush2.msra.mxu0 0.0
    %626 = vmatprep.subr.mxu0 0.0
    %627 = vmatpush2.msra.mxu0 0.0
    %628 = vmatprep.subr.mxu0 0.0
    %629 = vmatpush2.msra.mxu0 0.0
    %630 = vmatprep.mubr.f32.mxu0 0.0
    %631 = vmatmul.mubr.f32.gmra.mxu0 %v561
    %v632 = vpop.f32.mrf.mxu0
    %v633 = vadd.f32 0.0, %v632
    %v634 = vpop.f32.mrf.mxu0
    %635 = vdwg.mxu0
    %v636 = vadd.f32 %v565, %v633
    %v637 = vtanh.pop %v636
    %s638 = scalar_lea.vmem [#allocation3], 32
    %639 = vst [vmem:[%s638] sm:$0xff] %v637
    %s640 = scalar_lea.vmem [#allocation2], 40
    %v641 = vld [vmem:[%s640] sm:$0xff]
    %642 = vmatprep.subr.mxu0 0.0
    %643 = vmatpush1.msra.mxu0 %v104
    %644 = vmatprep.subr.mxu0 0.0
    %645 = vmatpush1.msra.mxu0 %v103
    %646 = vmatprep.subr.mxu0 0.0
    %647 = vmatpush1.msra.mxu0 %v102
    %648 = vmatprep.subr.mxu0 0.0
    %649 = vmatpush1.msra.mxu0 %v101
    %650 = vmatprep.subr.mxu0 0.0
    %651 = vmatpush1.msra.mxu0 %v100
    %652 = vmatprep.subr.mxu0 0.0
    %653 = vmatpush1.msra.mxu0 %v99
    %654 = vmatprep.subr.mxu0 0.0
    %655 = vmatpush1.msra.mxu0 %v98
    %656 = vmatprep.subr.mxu0 0.0
    %657 = vmatpush1.msra.mxu0 %v97
    %658 = vmatprep.subr.mxu0 0.0
    %659 = vmatpush1.msra.mxu0 %v96
    %660 = vmatprep.subr.mxu0 0.0
    %661 = vmatpush1.msra.mxu0 %v95
    %662 = vmatprep.subr.mxu0 0.0
    %663 = vmatpush1.msra.mxu0 %v94
    %664 = vmatprep.subr.mxu0 0.0
    %665 = vmatpush1.msra.mxu0 %v93
    %666 = vmatprep.subr.mxu0 0.0
    %667 = vmatpush1.msra.mxu0 %v92
    %668 = vmatprep.subr.mxu0 0.0
    %669 = vmatpush1.msra.mxu0 %v91
    %670 = vmatprep.subr.mxu0 0.0
    %671 = vmatpush1.msra.mxu0 %v90
    %672 = vmatprep.subr.mxu0 0.0
    %673 = vmatpush1.msra.mxu0 %v89
    %674 = vmatprep.subr.mxu0 0.0
    %675 = vmatpush2.msra.mxu0 0.0
    %676 = vmatprep.subr.mxu0 0.0
    %677 = vmatpush2.msra.mxu0 0.0
    %678 = vmatprep.subr.mxu0 0.0
    %679 = vmatpush2.msra.mxu0 0.0
    %680 = vmatprep.subr.mxu0 0.0
    %681 = vmatpush2.msra.mxu0 0.0
    %682 = vmatprep.subr.mxu0 0.0
    %683 = vmatpush2.msra.mxu0 0.0
    %684 = vmatprep.subr.mxu0 0.0
    %685 = vmatpush2.msra.mxu0 0.0
    %686 = vmatprep.subr.mxu0 0.0
    %687 = vmatpush2.msra.mxu0 0.0
    %688 = vmatprep.subr.mxu0 0.0
    %689 = vmatpush2.msra.mxu0 0.0
    %690 = vmatprep.subr.mxu0 0.0
    %691 = vmatpush2.msra.mxu0 0.0
    %692 = vmatprep.subr.mxu0 0.0
    %693 = vmatpush2.msra.mxu0 0.0
    %694 = vmatprep.subr.mxu0 0.0
    %695 = vmatpush2.msra.mxu0 0.0
    %696 = vmatprep.subr.mxu0 0.0
    %697 = vmatpush2.msra.mxu0 0.0
    %698 = vmatprep.subr.mxu0 0.0
    %699 = vmatpush2.msra.mxu0 0.0
    %700 = vmatprep.subr.mxu0 0.0
    %701 = vmatpush2.msra.mxu0 0.0
    %702 = vmatprep.subr.mxu0 0.0
    %703 = vmatpush2.msra.mxu0 0.0
    %704 = vmatprep.subr.mxu0 0.0
    %705 = vmatpush2.msra.mxu0 0.0
    %706 = vmatprep.mubr.f32.mxu0 0.0
    %707 = vmatmul.mubr.f32.gmra.mxu0 %v637
    %v708 = vpop.f32.mrf.mxu0
    %v709 = vadd.f32 0.0, %v708
    %v710 = vpop.f32.mrf.mxu0
    %711 = vdwg.mxu0
    %v712 = vadd.f32 %v641, %v709
    %v713 = vtanh.pop %v712
    %s714 = scalar_lea.vmem [#allocation3], 40
    %715 = vst [vmem:[%s714] sm:$0xff] %v713
    %s716 = scalar_lea.vmem [#allocation2], 48
    %v717 = vld [vmem:[%s716] sm:$0xff]
    %718 = vmatprep.subr.mxu0 0.0
    %719 = vmatpush1.msra.mxu0 %v104
    %720 = vmatprep.subr.mxu0 0.0
    %721 = vmatpush1.msra.mxu0 %v103
    %722 = vmatprep.subr.mxu0 0.0
    %723 = vmatpush1.msra.mxu0 %v102
    %724 = vmatprep.subr.mxu0 0.0
    %725 = vmatpush1.msra.mxu0 %v101
    %726 = vmatprep.subr.mxu0 0.0
    %727 = vmatpush1.msra.mxu0 %v100
    %728 = vmatprep.subr.mxu0 0.0
    %729 = vmatpush1.msra.mxu0 %v99
    %730 = vmatprep.subr.mxu0 0.0
    %731 = vmatpush1.msra.mxu0 %v98
    %732 = vmatprep.subr.mxu0 0.0
    %733 = vmatpush1.msra.mxu0 %v97
    %734 = vmatprep.subr.mxu0 0.0
    %735 = vmatpush1.msra.mxu0 %v96
    %736 = vmatprep.subr.mxu0 0.0
    %737 = vmatpush1.msra.mxu0 %v95
    %738 = vmatprep.subr.mxu0 0.0
    %739 = vmatpush1.msra.mxu0 %v94
    %740 = vmatprep.subr.mxu0 0.0
    %741 = vmatpush1.msra.mxu0 %v93
    %742 = vmatprep.subr.mxu0 0.0
    %743 = vmatpush1.msra.mxu0 %v92
    %744 = vmatprep.subr.mxu0 0.0
    %745 = vmatpush1.msra.mxu0 %v91
    %746 = vmatprep.subr.mxu0 0.0
    %747 = vmatpush1.msra.mxu0 %v90
    %748 = vmatprep.subr.mxu0 0.0
    %749 = vmatpush1.msra.mxu0 %v89
    %750 = vmatprep.subr.mxu0 0.0
    %751 = vmatpush2.msra.mxu0 0.0
    %752 = vmatprep.subr.mxu0 0.0
    %753 = vmatpush2.msra.mxu0 0.0
    %754 = vmatprep.subr.mxu0 0.0
    %755 = vmatpush2.msra.mxu0 0.0
    %756 = vmatprep.subr.mxu0 0.0
    %757 = vmatpush2.msra.mxu0 0.0
    %758 = vmatprep.subr.mxu0 0.0
    %759 = vmatpush2.msra.mxu0 0.0
    %760 = vmatprep.subr.mxu0 0.0
    %761 = vmatpush2.msra.mxu0 0.0
    %762 = vmatprep.subr.mxu0 0.0
    %763 = vmatpush2.msra.mxu0 0.0
    %764 = vmatprep.subr.mxu0 0.0
    %765 = vmatpush2.msra.mxu0 0.0
    %766 = vmatprep.subr.mxu0 0.0
    %767 = vmatpush2.msra.mxu0 0.0
    %768 = vmatprep.subr.mxu0 0.0
    %769 = vmatpush2.msra.mxu0 0.0
    %770 = vmatprep.subr.mxu0 0.0
    %771 = vmatpush2.msra.mxu0 0.0
    %772 = vmatprep.subr.mxu0 0.0
    %773 = vmatpush2.msra.mxu0 0.0
    %774 = vmatprep.subr.mxu0 0.0
    %775 = vmatpush2.msra.mxu0 0.0
    %776 = vmatprep.subr.mxu0 0.0
    %777 = vmatpush2.msra.mxu0 0.0
    %778 = vmatprep.subr.mxu0 0.0
    %779 = vmatpush2.msra.mxu0 0.0
    %780 = vmatprep.subr.mxu0 0.0
    %781 = vmatpush2.msra.mxu0 0.0
    %782 = vmatprep.mubr.f32.mxu0 0.0
    %783 = vmatmul.mubr.f32.gmra.mxu0 %v713
    %v784 = vpop.f32.mrf.mxu0
    %v785 = vadd.f32 0.0, %v784
    %v786 = vpop.f32.mrf.mxu0
    %787 = vdwg.mxu0
    %v788 = vadd.f32 %v717, %v785
    %v789 = vtanh.pop %v788
    %s790 = scalar_lea.vmem [#allocation3], 48
    %791 = vst [vmem:[%s790] sm:$0xff] %v789
    %s792 = scalar_lea.vmem [#allocation2], 56
    %v793 = vld [vmem:[%s792] sm:$0xff]
    %794 = vmatprep.subr.mxu0 0.0
    %795 = vmatpush1.msra.mxu0 %v104
    %796 = vmatprep.subr.mxu0 0.0
    %797 = vmatpush1.msra.mxu0 %v103
    %798 = vmatprep.subr.mxu0 0.0
    %799 = vmatpush1.msra.mxu0 %v102
    %800 = vmatprep.subr.mxu0 0.0
    %801 = vmatpush1.msra.mxu0 %v101
    %802 = vmatprep.subr.mxu0 0.0
    %803 = vmatpush1.msra.mxu0 %v100
    %804 = vmatprep.subr.mxu0 0.0
    %805 = vmatpush1.msra.mxu0 %v99
    %806 = vmatprep.subr.mxu0 0.0
    %807 = vmatpush1.msra.mxu0 %v98
    %808 = vmatprep.subr.mxu0 0.0
    %809 = vmatpush1.msra.mxu0 %v97
    %810 = vmatprep.subr.mxu0 0.0
    %811 = vmatpush1.msra.mxu0 %v96
    %812 = vmatprep.subr.mxu0 0.0
    %813 = vmatpush1.msra.mxu0 %v95
    %814 = vmatprep.subr.mxu0 0.0
    %815 = vmatpush1.msra.mxu0 %v94
    %816 = vmatprep.subr.mxu0 0.0
    %817 = vmatpush1.msra.mxu0 %v93
    %818 = vmatprep.subr.mxu0 0.0
    %819 = vmatpush1.msra.mxu0 %v92
    %820 = vmatprep.subr.mxu0 0.0
    %821 = vmatpush1.msra.mxu0 %v91
    %822 = vmatprep.subr.mxu0 0.0
    %823 = vmatpush1.msra.mxu0 %v90
    %824 = vmatprep.subr.mxu0 0.0
    %825 = vmatpush1.msra.mxu0 %v89
    %826 = vmatprep.subr.mxu0 0.0
    %827 = vmatpush2.msra.mxu0 0.0
    %828 = vmatprep.subr.mxu0 0.0
    %829 = vmatpush2.msra.mxu0 0.0
    %830 = vmatprep.subr.mxu0 0.0
    %831 = vmatpush2.msra.mxu0 0.0
    %832 = vmatprep.subr.mxu0 0.0
    %833 = vmatpush2.msra.mxu0 0.0
    %834 = vmatprep.subr.mxu0 0.0
    %835 = vmatpush2.msra.mxu0 0.0
    %836 = vmatprep.subr.mxu0 0.0
    %837 = vmatpush2.msra.mxu0 0.0
    %838 = vmatprep.subr.mxu0 0.0
    %839 = vmatpush2.msra.mxu0 0.0
    %840 = vmatprep.subr.mxu0 0.0
    %841 = vmatpush2.msra.mxu0 0.0
    %842 = vmatprep.subr.mxu0 0.0
    %843 = vmatpush2.msra.mxu0 0.0
    %844 = vmatprep.subr.mxu0 0.0
    %845 = vmatpush2.msra.mxu0 0.0
    %846 = vmatprep.subr.mxu0 0.0
    %847 = vmatpush2.msra.mxu0 0.0
    %848 = vmatprep.subr.mxu0 0.0
    %849 = vmatpush2.msra.mxu0 0.0
    %850 = vmatprep.subr.mxu0 0.0
    %851 = vmatpush2.msra.mxu0 0.0
    %852 = vmatprep.subr.mxu0 0.0
    %853 = vmatpush2.msra.mxu0 0.0
    %854 = vmatprep.subr.mxu0 0.0
    %855 = vmatpush2.msra.mxu0 0.0
    %856 = vmatprep.subr.mxu0 0.0
    %857 = vmatpush2.msra.mxu0 0.0
    %858 = vmatprep.mubr.f32.mxu0 0.0
    %859 = vmatmul.mubr.f32.gmra.mxu0 %v789
    %v860 = vpop.f32.mrf.mxu0
    %v861 = vadd.f32 0.0, %v860
    %v862 = vpop.f32.mrf.mxu0
    %863 = vdwg.mxu0
    %v864 = vadd.f32 %v793, %v861
    %v865 = vtanh.pop %v864
    %s866 = scalar_lea.vmem [#allocation3], 56
    %867 = vst [vmem:[%s866] sm:$0xff] %v865
    %v868 = vld [vmem:[#allocation7] sm:$0xff]
    %v869 = vld [vmem:[#allocation7 + $0x8] sm:$0xff]
    %v870 = vld [vmem:[#allocation7 + $0x10] sm:$0xff]
    %v871 = vld [vmem:[#allocation7 + $0x18] sm:$0xff]
    %v872 = vld [vmem:[#allocation7 + $0x20] sm:$0xff]
    %v873 = vld [vmem:[#allocation7 + $0x28] sm:$0xff]
    %v874 = vld [vmem:[#allocation7 + $0x30] sm:$0xff]
    %v875 = vld [vmem:[#allocation7 + $0x38] sm:$0xff]
    %v876 = vld [vmem:[#allocation7 + $0x40] sm:$0xff]
    %v877 = vld [vmem:[#allocation7 + $0x48] sm:$0xff]
    %v878 = vld [vmem:[#allocation7 + $0x50] sm:$0xff]
    %v879 = vld [vmem:[#allocation7 + $0x58] sm:$0xff]
    %v880 = vld [vmem:[#allocation7 + $0x60] sm:$0xff]
    %v881 = vld [vmem:[#allocation7 + $0x68] sm:$0xff]
    %v882 = vld [vmem:[#allocation7 + $0x70] sm:$0xff]
    %v883 = vld [vmem:[#allocation7 + $0x78] sm:$0xff]
    %v884 = vld [vmem:[#allocation9] sm:$0xff]
    %v885 = vld [vmem:[#allocation9 + $0x8] sm:$0xff]
    %v886 = vld [vmem:[#allocation9 + $0x10] sm:$0xff]
    %v887 = vld [vmem:[#allocation9 + $0x18] sm:$0xff]
    %v888 = vld [vmem:[#allocation9 + $0x20] sm:$0xff]
    %v889 = vld [vmem:[#allocation9 + $0x28] sm:$0xff]
    %v890 = vld [vmem:[#allocation9 + $0x30] sm:$0xff]
    %v891 = vld [vmem:[#allocation9 + $0x38] sm:$0xff]
    %v892 = vld [vmem:[#allocation9 + $0x40] sm:$0xff]
    %v893 = vld [vmem:[#allocation9 + $0x48] sm:$0xff]
    %v894 = vld [vmem:[#allocation9 + $0x50] sm:$0xff]
    %v895 = vld [vmem:[#allocation9 + $0x58] sm:$0xff]
    %v896 = vld [vmem:[#allocation9 + $0x60] sm:$0xff]
    %v897 = vld [vmem:[#allocation9 + $0x68] sm:$0xff]
    %v898 = vld [vmem:[#allocation9 + $0x70] sm:$0xff]
    %v899 = vld [vmem:[#allocation9 + $0x78] sm:$0xff]
    %v900 = vld [vmem:[%s6] sm:$0x1]
    %v901 = vld [vmem:[#allocation3] sm:$0xff]
    %v902 = vld [vmem:[#allocation3 + $0x8] sm:$0xff]
    %v903 = vld [vmem:[#allocation3 + $0x10] sm:$0xff]
    %v904 = vld [vmem:[#allocation3 + $0x18] sm:$0xff]
    %v905 = vld [vmem:[#allocation3 + $0x20] sm:$0xff]
    %v906 = vld [vmem:[#allocation3 + $0x28] sm:$0xff]
    %v907 = vld [vmem:[#allocation3 + $0x30] sm:$0xff]
    %v908 = vld [vmem:[#allocation3 + $0x38] sm:$0xff]
    %v910 = vlaneseq
    %v911 = vshrl.u32 %v910, 7
    %v912 = vsub.s32 0, %v911
    %v913 = vrot.slane %v900, %v912
    %915 = vmatprep.subr.mxu0 0.0
    %916 = vmatpush1.msra.mxu0 %v883
    %917 = vmatprep.subr.mxu0 0.0
    %918 = vmatpush1.msra.mxu0 %v882
    %919 = vmatprep.subr.mxu0 0.0
    %920 = vmatpush1.msra.mxu0 %v881
    %921 = vmatprep.subr.mxu0 0.0
    %922 = vmatpush1.msra.mxu0 %v880
    %923 = vmatprep.subr.mxu0 0.0
    %924 = vmatpush1.msra.mxu0 %v879
    %925 = vmatprep.subr.mxu0 0.0
    %926 = vmatpush1.msra.mxu0 %v878
    %927 = vmatprep.subr.mxu0 0.0
    %928 = vmatpush1.msra.mxu0 %v877
    %929 = vmatprep.subr.mxu0 0.0
    %930 = vmatpush1.msra.mxu0 %v876
    %931 = vmatprep.subr.mxu0 0.0
    %932 = vmatpush1.msra.mxu0 %v875
    %933 = vmatprep.subr.mxu0 0.0
    %934 = vmatpush1.msra.mxu0 %v874
    %935 = vmatprep.subr.mxu0 0.0
    %936 = vmatpush1.msra.mxu0 %v873
    %937 = vmatprep.subr.mxu0 0.0
    %938 = vmatpush1.msra.mxu0 %v872
    %939 = vmatprep.subr.mxu0 0.0
    %940 = vmatpush1.msra.mxu0 %v871
    %941 = vmatprep.subr.mxu0 0.0
    %942 = vmatpush1.msra.mxu0 %v870
    %943 = vmatprep.subr.mxu0 0.0
    %944 = vmatpush1.msra.mxu0 %v869
    %945 = vmatprep.subr.mxu0 0.0
    %946 = vmatpush1.msra.mxu0 %v868
    %947 = vmatprep.subr.mxu0 0.0
    %948 = vmatpush2.msra.mxu0 0.0
    %949 = vmatprep.subr.mxu0 0.0
    %950 = vmatpush2.msra.mxu0 0.0
    %951 = vmatprep.subr.mxu0 0.0
    %952 = vmatpush2.msra.mxu0 0.0
    %953 = vmatprep.subr.mxu0 0.0
    %954 = vmatpush2.msra.mxu0 0.0
    %955 = vmatprep.subr.mxu0 0.0
    %956 = vmatpush2.msra.mxu0 0.0
    %957 = vmatprep.subr.mxu0 0.0
    %958 = vmatpush2.msra.mxu0 0.0
    %959 = vmatprep.subr.mxu0 0.0
    %960 = vmatpush2.msra.mxu0 0.0
    %961 = vmatprep.subr.mxu0 0.0
    %962 = vmatpush2.msra.mxu0 0.0
    %963 = vmatprep.subr.mxu0 0.0
    %964 = vmatpush2.msra.mxu0 0.0
    %965 = vmatprep.subr.mxu0 0.0
    %966 = vmatpush2.msra.mxu0 0.0
    %967 = vmatprep.subr.mxu0 0.0
    %968 = vmatpush2.msra.mxu0 0.0
    %969 = vmatprep.subr.mxu0 0.0
    %970 = vmatpush2.msra.mxu0 0.0
    %971 = vmatprep.subr.mxu0 0.0
    %972 = vmatpush2.msra.mxu0 0.0
    %973 = vmatprep.subr.mxu0 0.0
    %974 = vmatpush2.msra.mxu0 0.0
    %975 = vmatprep.subr.mxu0 0.0
    %976 = vmatpush2.msra.mxu0 0.0
    %977 = vmatprep.subr.mxu0 0.0
    %978 = vmatpush2.msra.mxu0 0.0
    %979 = vmatprep.mubr.f32.mxu0 0.0
    %980 = vmatmul.mubr.f32.gmra.mxu0 %v901
    %v981 = vpop.f32.mrf.mxu0
    %v982 = vadd.f32 %v913, %v981
    %v983 = vpop.f32.mrf.mxu0
    %984 = vmatprep.mubr.f32.mxu0 0.0
    %985 = vmatmul.mubr.f32.gmra.mxu0 %v902
    %v986 = vpop.f32.mrf.mxu0
    %v987 = vadd.f32 %v913, %v986
    %v988 = vpop.f32.mrf.mxu0
    %989 = vmatprep.mubr.f32.mxu0 0.0
    %990 = vmatmul.mubr.f32.gmra.mxu0 %v903
    %v991 = vpop.f32.mrf.mxu0
    %v992 = vadd.f32 %v913, %v991
    %v993 = vpop.f32.mrf.mxu0
    %994 = vmatprep.mubr.f32.mxu0 0.0
    %995 = vmatmul.mubr.f32.gmra.mxu0 %v904
    %v996 = vpop.f32.mrf.mxu0
    %v997 = vadd.f32 %v913, %v996
    %v998 = vpop.f32.mrf.mxu0
    %999 = vmatprep.mubr.f32.mxu0 0.0
    %1000 = vmatmul.mubr.f32.gmra.mxu0 %v905
    %v1001 = vpop.f32.mrf.mxu0
    %v1002 = vadd.f32 %v913, %v1001
    %v1003 = vpop.f32.mrf.mxu0
    %1004 = vmatprep.mubr.f32.mxu0 0.0
    %1005 = vmatmul.mubr.f32.gmra.mxu0 %v906
    %v1006 = vpop.f32.mrf.mxu0
    %v1007 = vadd.f32 %v913, %v1006
    %v1008 = vpop.f32.mrf.mxu0
    %1009 = vmatprep.mubr.f32.mxu0 0.0
    %1010 = vmatmul.mubr.f32.gmra.mxu0 %v907
    %v1011 = vpop.f32.mrf.mxu0
    %v1012 = vadd.f32 %v913, %v1011
    %v1013 = vpop.f32.mrf.mxu0
    %1014 = vmatprep.mubr.f32.mxu0 0.0
    %1015 = vmatmul.mubr.f32.gmra.mxu0 %v908
    %v1016 = vpop.f32.mrf.mxu0
    %v1017 = vadd.f32 %v913, %v1016
    %v1018 = vpop.f32.mrf.mxu0
    %1019 = vdwg.mxu0
    %1020 = vst [vmem:[#allocation2] sm:$0xff] %v982
    %1021 = vst [vmem:[#allocation2 + $0x8] sm:$0xff] %v987
    %1022 = vst [vmem:[#allocation2 + $0x10] sm:$0xff] %v992
    %1023 = vst [vmem:[#allocation2 + $0x18] sm:$0xff] %v997
    %1024 = vst [vmem:[#allocation2 + $0x20] sm:$0xff] %v1002
    %1025 = vst [vmem:[#allocation2 + $0x28] sm:$0xff] %v1007
    %1026 = vst [vmem:[#allocation2 + $0x30] sm:$0xff] %v1012
    %1027 = vst [vmem:[#allocation2 + $0x38] sm:$0xff] %v1017
    %v1028 = vld [vmem:[#allocation2] sm:$0xff]
    %1029 = vmatprep.subr.mxu0 0.0
    %1030 = vmatpush1.msra.mxu0 %v899
    %1031 = vmatprep.subr.mxu0 0.0
    %1032 = vmatpush1.msra.mxu0 %v898
    %1033 = vmatprep.subr.mxu0 0.0
    %1034 = vmatpush1.msra.mxu0 %v897
    %1035 = vmatprep.subr.mxu0 0.0
    %1036 = vmatpush1.msra.mxu0 %v896
    %1037 = vmatprep.subr.mxu0 0.0
    %1038 = vmatpush1.msra.mxu0 %v895
    %1039 = vmatprep.subr.mxu0 0.0
    %1040 = vmatpush1.msra.mxu0 %v894
    %1041 = vmatprep.subr.mxu0 0.0
    %1042 = vmatpush1.msra.mxu0 %v893
    %1043 = vmatprep.subr.mxu0 0.0
    %1044 = vmatpush1.msra.mxu0 %v892
    %1045 = vmatprep.subr.mxu0 0.0
    %1046 = vmatpush1.msra.mxu0 %v891
    %1047 = vmatprep.subr.mxu0 0.0
    %1048 = vmatpush1.msra.mxu0 %v890
    %1049 = vmatprep.subr.mxu0 0.0
    %1050 = vmatpush1.msra.mxu0 %v889
    %1051 = vmatprep.subr.mxu0 0.0
    %1052 = vmatpush1.msra.mxu0 %v888
    %1053 = vmatprep.subr.mxu0 0.0
    %1054 = vmatpush1.msra.mxu0 %v887
    %1055 = vmatprep.subr.mxu0 0.0
    %1056 = vmatpush1.msra.mxu0 %v886
    %1057 = vmatprep.subr.mxu0 0.0
    %1058 = vmatpush1.msra.mxu0 %v885
    %1059 = vmatprep.subr.mxu0 0.0
    %1060 = vmatpush1.msra.mxu0 %v884
    %1061 = vmatprep.subr.mxu0 0.0
    %1062 = vmatpush2.msra.mxu0 0.0
    %1063 = vmatprep.subr.mxu0 0.0
    %1064 = vmatpush2.msra.mxu0 0.0
    %1065 = vmatprep.subr.mxu0 0.0
    %1066 = vmatpush2.msra.mxu0 0.0
    %1067 = vmatprep.subr.mxu0 0.0
    %1068 = vmatpush2.msra.mxu0 0.0
    %1069 = vmatprep.subr.mxu0 0.0
    %1070 = vmatpush2.msra.mxu0 0.0
    %1071 = vmatprep.subr.mxu0 0.0
    %1072 = vmatpush2.msra.mxu0 0.0
    %1073 = vmatprep.subr.mxu0 0.0
    %1074 = vmatpush2.msra.mxu0 0.0
    %1075 = vmatprep.subr.mxu0 0.0
    %1076 = vmatpush2.msra.mxu0 0.0
    %1077 = vmatprep.subr.mxu0 0.0
    %1078 = vmatpush2.msra.mxu0 0.0
    %1079 = vmatprep.subr.mxu0 0.0
    %1080 = vmatpush2.msra.mxu0 0.0
    %1081 = vmatprep.subr.mxu0 0.0
    %1082 = vmatpush2.msra.mxu0 0.0
    %1083 = vmatprep.subr.mxu0 0.0
    %1084 = vmatpush2.msra.mxu0 0.0
    %1085 = vmatprep.subr.mxu0 0.0
    %1086 = vmatpush2.msra.mxu0 0.0
    %1087 = vmatprep.subr.mxu0 0.0
    %1088 = vmatpush2.msra.mxu0 0.0
    %1089 = vmatprep.subr.mxu0 0.0
    %1090 = vmatpush2.msra.mxu0 0.0
    %1091 = vmatprep.subr.mxu0 0.0
    %1092 = vmatpush2.msra.mxu0 0.0
    %1093 = vmatprep.mubr.f32.mxu0 0.0
    %1094 = vmatmul.mubr.f32.gmra.mxu0 0.0
    %v1095 = vpop.f32.mrf.mxu0
    %v1096 = vadd.f32 0.0, %v1095
    %v1097 = vpop.f32.mrf.mxu0
    %1098 = vdwg.mxu0
    %v1099 = vadd.f32 %v1028, %v1096
    %v1100 = vtanh.pop %v1099
    %v1101 = vld [vmem:[%s336] sm:$0xff]
    %1102 = vmatprep.subr.mxu0 0.0
    %1103 = vmatpush1.msra.mxu0 %v899
    %1104 = vmatprep.subr.mxu0 0.0
    %1105 = vmatpush1.msra.mxu0 %v898
    %1106 = vmatprep.subr.mxu0 0.0
    %1107 = vmatpush1.msra.mxu0 %v897
    %1108 = vmatprep.subr.mxu0 0.0
    %1109 = vmatpush1.msra.mxu0 %v896
    %1110 = vmatprep.subr.mxu0 0.0
    %1111 = vmatpush1.msra.mxu0 %v895
    %1112 = vmatprep.subr.mxu0 0.0
    %1113 = vmatpush1.msra.mxu0 %v894
    %1114 = vmatprep.subr.mxu0 0.0
    %1115 = vmatpush1.msra.mxu0 %v893
    %1116 = vmatprep.subr.mxu0 0.0
    %1117 = vmatpush1.msra.mxu0 %v892
    %1118 = vmatprep.subr.mxu0 0.0
    %1119 = vmatpush1.msra.mxu0 %v891
    %1120 = vmatprep.subr.mxu0 0.0
    %1121 = vmatpush1.msra.mxu0 %v890
    %1122 = vmatprep.subr.mxu0 0.0
    %1123 = vmatpush1.msra.mxu0 %v889
    %1124 = vmatprep.subr.mxu0 0.0
    %1125 = vmatpush1.msra.mxu0 %v888
    %1126 = vmatprep.subr.mxu0 0.0
    %1127 = vmatpush1.msra.mxu0 %v887
    %1128 = vmatprep.subr.mxu0 0.0
    %1129 = vmatpush1.msra.mxu0 %v886
    %1130 = vmatprep.subr.mxu0 0.0
    %1131 = vmatpush1.msra.mxu0 %v885
    %1132 = vmatprep.subr.mxu0 0.0
    %1133 = vmatpush1.msra.mxu0 %v884
    %1134 = vmatprep.subr.mxu0 0.0
    %1135 = vmatpush2.msra.mxu0 0.0
    %1136 = vmatprep.subr.mxu0 0.0
    %1137 = vmatpush2.msra.mxu0 0.0
    %1138 = vmatprep.subr.mxu0 0.0
    %1139 = vmatpush2.msra.mxu0 0.0
    %1140 = vmatprep.subr.mxu0 0.0
    %1141 = vmatpush2.msra.mxu0 0.0
    %1142 = vmatprep.subr.mxu0 0.0
    %1143 = vmatpush2.msra.mxu0 0.0
    %1144 = vmatprep.subr.mxu0 0.0
    %1145 = vmatpush2.msra.mxu0 0.0
    %1146 = vmatprep.subr.mxu0 0.0
    %1147 = vmatpush2.msra.mxu0 0.0
    %1148 = vmatprep.subr.mxu0 0.0
    %1149 = vmatpush2.msra.mxu0 0.0
    %1150 = vmatprep.subr.mxu0 0.0
    %1151 = vmatpush2.msra.mxu0 0.0
    %1152 = vmatprep.subr.mxu0 0.0
    %1153 = vmatpush2.msra.mxu0 0.0
    %1154 = vmatprep.subr.mxu0 0.0
    %1155 = vmatpush2.msra.mxu0 0.0
    %1156 = vmatprep.subr.mxu0 0.0
    %1157 = vmatpush2.msra.mxu0 0.0
    %1158 = vmatprep.subr.mxu0 0.0
    %1159 = vmatpush2.msra.mxu0 0.0
    %1160 = vmatprep.subr.mxu0 0.0
    %1161 = vmatpush2.msra.mxu0 0.0
    %1162 = vmatprep.subr.mxu0 0.0
    %1163 = vmatpush2.msra.mxu0 0.0
    %1164 = vmatprep.subr.mxu0 0.0
    %1165 = vmatpush2.msra.mxu0 0.0
    %1166 = vmatprep.mubr.f32.mxu0 0.0
    %1167 = vmatmul.mubr.f32.gmra.mxu0 %v1100
    %v1168 = vpop.f32.mrf.mxu0
    %v1169 = vadd.f32 0.0, %v1168
    %v1170 = vpop.f32.mrf.mxu0
    %1171 = vdwg.mxu0
    %v1172 = vadd.f32 %v1101, %v1169
    %v1173 = vtanh.pop %v1172
    %v1174 = vld [vmem:[%s412] sm:$0xff]
    %1175 = vmatprep.subr.mxu0 0.0
    %1176 = vmatpush1.msra.mxu0 %v899
    %1177 = vmatprep.subr.mxu0 0.0
    %1178 = vmatpush1.msra.mxu0 %v898
    %1179 = vmatprep.subr.mxu0 0.0
    %1180 = vmatpush1.msra.mxu0 %v897
    %1181 = vmatprep.subr.mxu0 0.0
    %1182 = vmatpush1.msra.mxu0 %v896
    %1183 = vmatprep.subr.mxu0 0.0
    %1184 = vmatpush1.msra.mxu0 %v895
    %1185 = vmatprep.subr.mxu0 0.0
    %1186 = vmatpush1.msra.mxu0 %v894
    %1187 = vmatprep.subr.mxu0 0.0
    %1188 = vmatpush1.msra.mxu0 %v893
    %1189 = vmatprep.subr.mxu0 0.0
    %1190 = vmatpush1.msra.mxu0 %v892
    %1191 = vmatprep.subr.mxu0 0.0
    %1192 = vmatpush1.msra.mxu0 %v891
    %1193 = vmatprep.subr.mxu0 0.0
    %1194 = vmatpush1.msra.mxu0 %v890
    %1195 = vmatprep.subr.mxu0 0.0
    %1196 = vmatpush1.msra.mxu0 %v889
    %1197 = vmatprep.subr.mxu0 0.0
    %1198 = vmatpush1.msra.mxu0 %v888
    %1199 = vmatprep.subr.mxu0 0.0
    %1200 = vmatpush1.msra.mxu0 %v887
    %1201 = vmatprep.subr.mxu0 0.0
    %1202 = vmatpush1.msra.mxu0 %v886
    %1203 = vmatprep.subr.mxu0 0.0
    %1204 = vmatpush1.msra.mxu0 %v885
    %1205 = vmatprep.subr.mxu0 0.0
    %1206 = vmatpush1.msra.mxu0 %v884
    %1207 = vmatprep.subr.mxu0 0.0
    %1208 = vmatpush2.msra.mxu0 0.0
    %1209 = vmatprep.subr.mxu0 0.0
    %1210 = vmatpush2.msra.mxu0 0.0
    %1211 = vmatprep.subr.mxu0 0.0
    %1212 = vmatpush2.msra.mxu0 0.0
    %1213 = vmatprep.subr.mxu0 0.0
    %1214 = vmatpush2.msra.mxu0 0.0
    %1215 = vmatprep.subr.mxu0 0.0
    %1216 = vmatpush2.msra.mxu0 0.0
    %1217 = vmatprep.subr.mxu0 0.0
    %1218 = vmatpush2.msra.mxu0 0.0
    %1219 = vmatprep.subr.mxu0 0.0
    %1220 = vmatpush2.msra.mxu0 0.0
    %1221 = vmatprep.subr.mxu0 0.0
    %1222 = vmatpush2.msra.mxu0 0.0
    %1223 = vmatprep.subr.mxu0 0.0
    %1224 = vmatpush2.msra.mxu0 0.0
    %1225 = vmatprep.subr.mxu0 0.0
    %1226 = vmatpush2.msra.mxu0 0.0
    %1227 = vmatprep.subr.mxu0 0.0
    %1228 = vmatpush2.msra.mxu0 0.0
    %1229 = vmatprep.subr.mxu0 0.0
    %1230 = vmatpush2.msra.mxu0 0.0
    %1231 = vmatprep.subr.mxu0 0.0
    %1232 = vmatpush2.msra.mxu0 0.0
    %1233 = vmatprep.subr.mxu0 0.0
    %1234 = vmatpush2.msra.mxu0 0.0
    %1235 = vmatprep.subr.mxu0 0.0
    %1236 = vmatpush2.msra.mxu0 0.0
    %1237 = vmatprep.subr.mxu0 0.0
    %1238 = vmatpush2.msra.mxu0 0.0
    %1239 = vmatprep.mubr.f32.mxu0 0.0
    %1240 = vmatmul.mubr.f32.gmra.mxu0 %v1173
    %v1241 = vpop.f32.mrf.mxu0
    %v1242 = vadd.f32 0.0, %v1241
    %v1243 = vpop.f32.mrf.mxu0
    %1244 = vdwg.mxu0
    %v1245 = vadd.f32 %v1174, %v1242
    %v1246 = vtanh.pop %v1245
    %v1247 = vld [vmem:[%s488] sm:$0xff]
    %1248 = vmatprep.subr.mxu0 0.0
    %1249 = vmatpush1.msra.mxu0 %v899
    %1250 = vmatprep.subr.mxu0 0.0
    %1251 = vmatpush1.msra.mxu0 %v898
    %1252 = vmatprep.subr.mxu0 0.0
    %1253 = vmatpush1.msra.mxu0 %v897
    %1254 = vmatprep.subr.mxu0 0.0
    %1255 = vmatpush1.msra.mxu0 %v896
    %1256 = vmatprep.subr.mxu0 0.0
    %1257 = vmatpush1.msra.mxu0 %v895
    %1258 = vmatprep.subr.mxu0 0.0
    %1259 = vmatpush1.msra.mxu0 %v894
    %1260 = vmatprep.subr.mxu0 0.0
    %1261 = vmatpush1.msra.mxu0 %v893
    %1262 = vmatprep.subr.mxu0 0.0
    %1263 = vmatpush1.msra.mxu0 %v892
    %1264 = vmatprep.subr.mxu0 0.0
    %1265 = vmatpush1.msra.mxu0 %v891
    %1266 = vmatprep.subr.mxu0 0.0
    %1267 = vmatpush1.msra.mxu0 %v890
    %1268 = vmatprep.subr.mxu0 0.0
    %1269 = vmatpush1.msra.mxu0 %v889
    %1270 = vmatprep.subr.mxu0 0.0
    %1271 = vmatpush1.msra.mxu0 %v888
    %1272 = vmatprep.subr.mxu0 0.0
    %1273 = vmatpush1.msra.mxu0 %v887
    %1274 = vmatprep.subr.mxu0 0.0
    %1275 = vmatpush1.msra.mxu0 %v886
    %1276 = vmatprep.subr.mxu0 0.0
    %1277 = vmatpush1.msra.mxu0 %v885
    %1278 = vmatprep.subr.mxu0 0.0
    %1279 = vmatpush1.msra.mxu0 %v884
    %1280 = vmatprep.subr.mxu0 0.0
    %1281 = vmatpush2.msra.mxu0 0.0
    %1282 = vmatprep.subr.mxu0 0.0
    %1283 = vmatpush2.msra.mxu0 0.0
    %1284 = vmatprep.subr.mxu0 0.0
    %1285 = vmatpush2.msra.mxu0 0.0
    %1286 = vmatprep.subr.mxu0 0.0
    %1287 = vmatpush2.msra.mxu0 0.0
    %1288 = vmatprep.subr.mxu0 0.0
    %1289 = vmatpush2.msra.mxu0 0.0
    %1290 = vmatprep.subr.mxu0 0.0
    %1291 = vmatpush2.msra.mxu0 0.0
    %1292 = vmatprep.subr.mxu0 0.0
    %1293 = vmatpush2.msra.mxu0 0.0
    %1294 = vmatprep.subr.mxu0 0.0
    %1295 = vmatpush2.msra.mxu0 0.0
    %1296 = vmatprep.subr.mxu0 0.0
    %1297 = vmatpush2.msra.mxu0 0.0
    %1298 = vmatprep.subr.mxu0 0.0
    %1299 = vmatpush2.msra.mxu0 0.0
    %1300 = vmatprep.subr.mxu0 0.0
    %1301 = vmatpush2.msra.mxu0 0.0
    %1302 = vmatprep.subr.mxu0 0.0
    %1303 = vmatpush2.msra.mxu0 0.0
    %1304 = vmatprep.subr.mxu0 0.0
    %1305 = vmatpush2.msra.mxu0 0.0
    %1306 = vmatprep.subr.mxu0 0.0
    %1307 = vmatpush2.msra.mxu0 0.0
    %1308 = vmatprep.subr.mxu0 0.0
    %1309 = vmatpush2.msra.mxu0 0.0
    %1310 = vmatprep.subr.mxu0 0.0
    %1311 = vmatpush2.msra.mxu0 0.0
    %1312 = vmatprep.mubr.f32.mxu0 0.0
    %1313 = vmatmul.mubr.f32.gmra.mxu0 %v1246
    %v1314 = vpop.f32.mrf.mxu0
    %v1315 = vadd.f32 0.0, %v1314
    %v1316 = vpop.f32.mrf.mxu0
    %1317 = vdwg.mxu0
    %v1318 = vadd.f32 %v1247, %v1315
    %v1319 = vtanh.pop %v1318
    %v1320 = vld [vmem:[%s564] sm:$0xff]
    %1321 = vmatprep.subr.mxu0 0.0
    %1322 = vmatpush1.msra.mxu0 %v899
    %1323 = vmatprep.subr.mxu0 0.0
    %1324 = vmatpush1.msra.mxu0 %v898
    %1325 = vmatprep.subr.mxu0 0.0
    %1326 = vmatpush1.msra.mxu0 %v897
    %1327 = vmatprep.subr.mxu0 0.0
    %1328 = vmatpush1.msra.mxu0 %v896
    %1329 = vmatprep.subr.mxu0 0.0
    %1330 = vmatpush1.msra.mxu0 %v895
    %1331 = vmatprep.subr.mxu0 0.0
    %1332 = vmatpush1.msra.mxu0 %v894
    %1333 = vmatprep.subr.mxu0 0.0
    %1334 = vmatpush1.msra.mxu0 %v893
    %1335 = vmatprep.subr.mxu0 0.0
    %1336 = vmatpush1.msra.mxu0 %v892
    %1337 = vmatprep.subr.mxu0 0.0
    %1338 = vmatpush1.msra.mxu0 %v891
    %1339 = vmatprep.subr.mxu0 0.0
    %1340 = vmatpush1.msra.mxu0 %v890
    %1341 = vmatprep.subr.mxu0 0.0
    %1342 = vmatpush1.msra.mxu0 %v889
    %1343 = vmatprep.subr.mxu0 0.0
    %1344 = vmatpush1.msra.mxu0 %v888
    %1345 = vmatprep.subr.mxu0 0.0
    %1346 = vmatpush1.msra.mxu0 %v887
    %1347 = vmatprep.subr.mxu0 0.0
    %1348 = vmatpush1.msra.mxu0 %v886
    %1349 = vmatprep.subr.mxu0 0.0
    %1350 = vmatpush1.msra.mxu0 %v885
    %1351 = vmatprep.subr.mxu0 0.0
    %1352 = vmatpush1.msra.mxu0 %v884
    %1353 = vmatprep.subr.mxu0 0.0
    %1354 = vmatpush2.msra.mxu0 0.0
    %1355 = vmatprep.subr.mxu0 0.0
    %1356 = vmatpush2.msra.mxu0 0.0
    %1357 = vmatprep.subr.mxu0 0.0
    %1358 = vmatpush2.msra.mxu0 0.0
    %1359 = vmatprep.subr.mxu0 0.0
    %1360 = vmatpush2.msra.mxu0 0.0
    %1361 = vmatprep.subr.mxu0 0.0
    %1362 = vmatpush2.msra.mxu0 0.0
    %1363 = vmatprep.subr.mxu0 0.0
    %1364 = vmatpush2.msra.mxu0 0.0
    %1365 = vmatprep.subr.mxu0 0.0
    %1366 = vmatpush2.msra.mxu0 0.0
    %1367 = vmatprep.subr.mxu0 0.0
    %1368 = vmatpush2.msra.mxu0 0.0
    %1369 = vmatprep.subr.mxu0 0.0
    %1370 = vmatpush2.msra.mxu0 0.0
    %1371 = vmatprep.subr.mxu0 0.0
    %1372 = vmatpush2.msra.mxu0 0.0
    %1373 = vmatprep.subr.mxu0 0.0
    %1374 = vmatpush2.msra.mxu0 0.0
    %1375 = vmatprep.subr.mxu0 0.0
    %1376 = vmatpush2.msra.mxu0 0.0
    %1377 = vmatprep.subr.mxu0 0.0
    %1378 = vmatpush2.msra.mxu0 0.0
    %1379 = vmatprep.subr.mxu0 0.0
    %1380 = vmatpush2.msra.mxu0 0.0
    %1381 = vmatprep.subr.mxu0 0.0
    %1382 = vmatpush2.msra.mxu0 0.0
    %1383 = vmatprep.subr.mxu0 0.0
    %1384 = vmatpush2.msra.mxu0 0.0
    %1385 = vmatprep.mubr.f32.mxu0 0.0
    %1386 = vmatmul.mubr.f32.gmra.mxu0 %v1319
    %v1387 = vpop.f32.mrf.mxu0
    %v1388 = vadd.f32 0.0, %v1387
    %v1389 = vpop.f32.mrf.mxu0
    %1390 = vdwg.mxu0
    %v1391 = vadd.f32 %v1320, %v1388
    %v1392 = vtanh.pop %v1391
    %v1393 = vld [vmem:[%s640] sm:$0xff]
    %1394 = vmatprep.subr.mxu0 0.0
    %1395 = vmatpush1.msra.mxu0 %v899
    %1396 = vmatprep.subr.mxu0 0.0
    %1397 = vmatpush1.msra.mxu0 %v898
    %1398 = vmatprep.subr.mxu0 0.0
    %1399 = vmatpush1.msra.mxu0 %v897
    %1400 = vmatprep.subr.mxu0 0.0
    %1401 = vmatpush1.msra.mxu0 %v896
    %1402 = vmatprep.subr.mxu0 0.0
    %1403 = vmatpush1.msra.mxu0 %v895
    %1404 = vmatprep.subr.mxu0 0.0
    %1405 = vmatpush1.msra.mxu0 %v894
    %1406 = vmatprep.subr.mxu0 0.0
    %1407 = vmatpush1.msra.mxu0 %v893
    %1408 = vmatprep.subr.mxu0 0.0
    %1409 = vmatpush1.msra.mxu0 %v892
    %1410 = vmatprep.subr.mxu0 0.0
    %1411 = vmatpush1.msra.mxu0 %v891
    %1412 = vmatprep.subr.mxu0 0.0
    %1413 = vmatpush1.msra.mxu0 %v890
    %1414 = vmatprep.subr.mxu0 0.0
    %1415 = vmatpush1.msra.mxu0 %v889
    %1416 = vmatprep.subr.mxu0 0.0
    %1417 = vmatpush1.msra.mxu0 %v888
    %1418 = vmatprep.subr.mxu0 0.0
    %1419 = vmatpush1.msra.mxu0 %v887
    %1420 = vmatprep.subr.mxu0 0.0
    %1421 = vmatpush1.msra.mxu0 %v886
    %1422 = vmatprep.subr.mxu0 0.0
    %1423 = vmatpush1.msra.mxu0 %v885
    %1424 = vmatprep.subr.mxu0 0.0
    %1425 = vmatpush1.msra.mxu0 %v884
    %1426 = vmatprep.subr.mxu0 0.0
    %1427 = vmatpush2.msra.mxu0 0.0
    %1428 = vmatprep.subr.mxu0 0.0
    %1429 = vmatpush2.msra.mxu0 0.0
    %1430 = vmatprep.subr.mxu0 0.0
    %1431 = vmatpush2.msra.mxu0 0.0
    %1432 = vmatprep.subr.mxu0 0.0
    %1433 = vmatpush2.msra.mxu0 0.0
    %1434 = vmatprep.subr.mxu0 0.0
    %1435 = vmatpush2.msra.mxu0 0.0
    %1436 = vmatprep.subr.mxu0 0.0
    %1437 = vmatpush2.msra.mxu0 0.0
    %1438 = vmatprep.subr.mxu0 0.0
    %1439 = vmatpush2.msra.mxu0 0.0
    %1440 = vmatprep.subr.mxu0 0.0
    %1441 = vmatpush2.msra.mxu0 0.0
    %1442 = vmatprep.subr.mxu0 0.0
    %1443 = vmatpush2.msra.mxu0 0.0
    %1444 = vmatprep.subr.mxu0 0.0
    %1445 = vmatpush2.msra.mxu0 0.0
    %1446 = vmatprep.subr.mxu0 0.0
    %1447 = vmatpush2.msra.mxu0 0.0
    %1448 = vmatprep.subr.mxu0 0.0
    %1449 = vmatpush2.msra.mxu0 0.0
    %1450 = vmatprep.subr.mxu0 0.0
    %1451 = vmatpush2.msra.mxu0 0.0
    %1452 = vmatprep.subr.mxu0 0.0
    %1453 = vmatpush2.msra.mxu0 0.0
    %1454 = vmatprep.subr.mxu0 0.0
    %1455 = vmatpush2.msra.mxu0 0.0
    %1456 = vmatprep.subr.mxu0 0.0
    %1457 = vmatpush2.msra.mxu0 0.0
    %1458 = vmatprep.mubr.f32.mxu0 0.0
    %1459 = vmatmul.mubr.f32.gmra.mxu0 %v1392
    %v1460 = vpop.f32.mrf.mxu0
    %v1461 = vadd.f32 0.0, %v1460
    %v1462 = vpop.f32.mrf.mxu0
    %1463 = vdwg.mxu0
    %v1464 = vadd.f32 %v1393, %v1461
    %v1465 = vtanh.pop %v1464
    %v1466 = vld [vmem:[%s716] sm:$0xff]
    %1467 = vmatprep.subr.mxu0 0.0
    %1468 = vmatpush1.msra.mxu0 %v899
    %1469 = vmatprep.subr.mxu0 0.0
    %1470 = vmatpush1.msra.mxu0 %v898
    %1471 = vmatprep.subr.mxu0 0.0
    %1472 = vmatpush1.msra.mxu0 %v897
    %1473 = vmatprep.subr.mxu0 0.0
    %1474 = vmatpush1.msra.mxu0 %v896
    %1475 = vmatprep.subr.mxu0 0.0
    %1476 = vmatpush1.msra.mxu0 %v895
    %1477 = vmatprep.subr.mxu0 0.0
    %1478 = vmatpush1.msra.mxu0 %v894
    %1479 = vmatprep.subr.mxu0 0.0
    %1480 = vmatpush1.msra.mxu0 %v893
    %1481 = vmatprep.subr.mxu0 0.0
    %1482 = vmatpush1.msra.mxu0 %v892
    %1483 = vmatprep.subr.mxu0 0.0
    %1484 = vmatpush1.msra.mxu0 %v891
    %1485 = vmatprep.subr.mxu0 0.0
    %1486 = vmatpush1.msra.mxu0 %v890
    %1487 = vmatprep.subr.mxu0 0.0
    %1488 = vmatpush1.msra.mxu0 %v889
    %1489 = vmatprep.subr.mxu0 0.0
    %1490 = vmatpush1.msra.mxu0 %v888
    %1491 = vmatprep.subr.mxu0 0.0
    %1492 = vmatpush1.msra.mxu0 %v887
    %1493 = vmatprep.subr.mxu0 0.0
    %1494 = vmatpush1.msra.mxu0 %v886
    %1495 = vmatprep.subr.mxu0 0.0
    %1496 = vmatpush1.msra.mxu0 %v885
    %1497 = vmatprep.subr.mxu0 0.0
    %1498 = vmatpush1.msra.mxu0 %v884
    %1499 = vmatprep.subr.mxu0 0.0
    %1500 = vmatpush2.msra.mxu0 0.0
    %1501 = vmatprep.subr.mxu0 0.0
    %1502 = vmatpush2.msra.mxu0 0.0
    %1503 = vmatprep.subr.mxu0 0.0
    %1504 = vmatpush2.msra.mxu0 0.0
    %1505 = vmatprep.subr.mxu0 0.0
    %1506 = vmatpush2.msra.mxu0 0.0
    %1507 = vmatprep.subr.mxu0 0.0
    %1508 = vmatpush2.msra.mxu0 0.0
    %1509 = vmatprep.subr.mxu0 0.0
    %1510 = vmatpush2.msra.mxu0 0.0
    %1511 = vmatprep.subr.mxu0 0.0
    %1512 = vmatpush2.msra.mxu0 0.0
    %1513 = vmatprep.subr.mxu0 0.0
    %1514 = vmatpush2.msra.mxu0 0.0
    %1515 = vmatprep.subr.mxu0 0.0
    %1516 = vmatpush2.msra.mxu0 0.0
    %1517 = vmatprep.subr.mxu0 0.0
    %1518 = vmatpush2.msra.mxu0 0.0
    %1519 = vmatprep.subr.mxu0 0.0
    %1520 = vmatpush2.msra.mxu0 0.0
    %1521 = vmatprep.subr.mxu0 0.0
    %1522 = vmatpush2.msra.mxu0 0.0
    %1523 = vmatprep.subr.mxu0 0.0
    %1524 = vmatpush2.msra.mxu0 0.0
    %1525 = vmatprep.subr.mxu0 0.0
    %1526 = vmatpush2.msra.mxu0 0.0
    %1527 = vmatprep.subr.mxu0 0.0
    %1528 = vmatpush2.msra.mxu0 0.0
    %1529 = vmatprep.subr.mxu0 0.0
    %1530 = vmatpush2.msra.mxu0 0.0
    %1531 = vmatprep.mubr.f32.mxu0 0.0
    %1532 = vmatmul.mubr.f32.gmra.mxu0 %v1465
    %v1533 = vpop.f32.mrf.mxu0
    %v1534 = vadd.f32 0.0, %v1533
    %v1535 = vpop.f32.mrf.mxu0
    %1536 = vdwg.mxu0
    %v1537 = vadd.f32 %v1466, %v1534
    %v1538 = vtanh.pop %v1537
    %v1539 = vld [vmem:[%s792] sm:$0xff]
    %1540 = vmatprep.subr.mxu0 0.0
    %1541 = vmatpush1.msra.mxu0 %v899
    %1542 = vmatprep.subr.mxu0 0.0
    %1543 = vmatpush1.msra.mxu0 %v898
    %1544 = vmatprep.subr.mxu0 0.0
    %1545 = vmatpush1.msra.mxu0 %v897
    %1546 = vmatprep.subr.mxu0 0.0
    %1547 = vmatpush1.msra.mxu0 %v896
    %1548 = vmatprep.subr.mxu0 0.0
    %1549 = vmatpush1.msra.mxu0 %v895
    %1550 = vmatprep.subr.mxu0 0.0
    %1551 = vmatpush1.msra.mxu0 %v894
    %1552 = vmatprep.subr.mxu0 0.0
    %1553 = vmatpush1.msra.mxu0 %v893
    %1554 = vmatprep.subr.mxu0 0.0
    %1555 = vmatpush1.msra.mxu0 %v892
    %1556 = vmatprep.subr.mxu0 0.0
    %1557 = vmatpush1.msra.mxu0 %v891
    %1558 = vmatprep.subr.mxu0 0.0
    %1559 = vmatpush1.msra.mxu0 %v890
    %1560 = vmatprep.subr.mxu0 0.0
    %1561 = vmatpush1.msra.mxu0 %v889
    %1562 = vmatprep.subr.mxu0 0.0
    %1563 = vmatpush1.msra.mxu0 %v888
    %1564 = vmatprep.subr.mxu0 0.0
    %1565 = vmatpush1.msra.mxu0 %v887
    %1566 = vmatprep.subr.mxu0 0.0
    %1567 = vmatpush1.msra.mxu0 %v886
    %1568 = vmatprep.subr.mxu0 0.0
    %1569 = vmatpush1.msra.mxu0 %v885
    %1570 = vmatprep.subr.mxu0 0.0
    %1571 = vmatpush1.msra.mxu0 %v884
    %1572 = vmatprep.subr.mxu0 0.0
    %1573 = vmatpush2.msra.mxu0 0.0
    %1574 = vmatprep.subr.mxu0 0.0
    %1575 = vmatpush2.msra.mxu0 0.0
    %1576 = vmatprep.subr.mxu0 0.0
    %1577 = vmatpush2.msra.mxu0 0.0
    %1578 = vmatprep.subr.mxu0 0.0
    %1579 = vmatpush2.msra.mxu0 0.0
    %1580 = vmatprep.subr.mxu0 0.0
    %1581 = vmatpush2.msra.mxu0 0.0
    %1582 = vmatprep.subr.mxu0 0.0
    %1583 = vmatpush2.msra.mxu0 0.0
    %1584 = vmatprep.subr.mxu0 0.0
    %1585 = vmatpush2.msra.mxu0 0.0
    %1586 = vmatprep.subr.mxu0 0.0
    %1587 = vmatpush2.msra.mxu0 0.0
    %1588 = vmatprep.subr.mxu0 0.0
    %1589 = vmatpush2.msra.mxu0 0.0
    %1590 = vmatprep.subr.mxu0 0.0
    %1591 = vmatpush2.msra.mxu0 0.0
    %1592 = vmatprep.subr.mxu0 0.0
    %1593 = vmatpush2.msra.mxu0 0.0
    %1594 = vmatprep.subr.mxu0 0.0
    %1595 = vmatpush2.msra.mxu0 0.0
    %1596 = vmatprep.subr.mxu0 0.0
    %1597 = vmatpush2.msra.mxu0 0.0
    %1598 = vmatprep.subr.mxu0 0.0
    %1599 = vmatpush2.msra.mxu0 0.0
    %1600 = vmatprep.subr.mxu0 0.0
    %1601 = vmatpush2.msra.mxu0 0.0
    %1602 = vmatprep.subr.mxu0 0.0
    %1603 = vmatpush2.msra.mxu0 0.0
    %1604 = vmatprep.mubr.f32.mxu0 0.0
    %1605 = vmatmul.mubr.f32.gmra.mxu0 %v1538
    %v1606 = vpop.f32.mrf.mxu0
    %v1607 = vadd.f32 0.0, %v1606
    %v1608 = vpop.f32.mrf.mxu0
    %1609 = vdwg.mxu0
    %v1610 = vadd.f32 %v1539, %v1607
    %v1611 = vtanh.pop %v1610
    %v1612 = vld [vmem:[#allocation10] sm:$0xff]
    %v1613 = vld [vmem:[#allocation10 + $0x8] sm:$0xff]
    %v1614 = vld [vmem:[#allocation10 + $0x10] sm:$0xff]
    %v1615 = vld [vmem:[#allocation10 + $0x18] sm:$0xff]
    %v1616 = vld [vmem:[#allocation10 + $0x20] sm:$0xff]
    %v1617 = vld [vmem:[#allocation10 + $0x28] sm:$0xff]
    %v1618 = vld [vmem:[#allocation10 + $0x30] sm:$0xff]
    %v1619 = vld [vmem:[#allocation10 + $0x38] sm:$0xff]
    %v1620 = vld [vmem:[#allocation10 + $0x40] sm:$0xff]
    %v1621 = vld [vmem:[#allocation10 + $0x48] sm:$0xff]
    %v1622 = vld [vmem:[#allocation10 + $0x50] sm:$0xff]
    %v1623 = vld [vmem:[#allocation10 + $0x58] sm:$0xff]
    %v1624 = vld [vmem:[#allocation10 + $0x60] sm:$0xff]
    %v1625 = vld [vmem:[#allocation10 + $0x68] sm:$0xff]
    %v1626 = vld [vmem:[#allocation10 + $0x70] sm:$0xff]
    %v1627 = vld [vmem:[#allocation10 + $0x78] sm:$0xff]
    %v1628 = vld [vmem:[%s8] sm:$0x1]
    %v1630 = vlaneseq
    %v1631 = vshrl.u32 %v1630, 7
    %v1632 = vsub.s32 0, %v1631
    %v1633 = vrot.slane %v1628, %v1632
    %1635 = vmatprep.subr.mxu0 0.0
    %1636 = vmatpush1.msra.mxu0 %v1627
    %1637 = vmatprep.subr.mxu0 0.0
    %1638 = vmatpush1.msra.mxu0 %v1626
    %1639 = vmatprep.subr.mxu0 0.0
    %1640 = vmatpush1.msra.mxu0 %v1625
    %1641 = vmatprep.subr.mxu0 0.0
    %1642 = vmatpush1.msra.mxu0 %v1624
    %1643 = vmatprep.subr.mxu0 0.0
    %1644 = vmatpush1.msra.mxu0 %v1623
    %1645 = vmatprep.subr.mxu0 0.0
    %1646 = vmatpush1.msra.mxu0 %v1622
    %1647 = vmatprep.subr.mxu0 0.0
    %1648 = vmatpush1.msra.mxu0 %v1621
    %1649 = vmatprep.subr.mxu0 0.0
    %1650 = vmatpush1.msra.mxu0 %v1620
    %1651 = vmatprep.subr.mxu0 0.0
    %1652 = vmatpush1.msra.mxu0 %v1619
    %1653 = vmatprep.subr.mxu0 0.0
    %1654 = vmatpush1.msra.mxu0 %v1618
    %1655 = vmatprep.subr.mxu0 0.0
    %1656 = vmatpush1.msra.mxu0 %v1617
    %1657 = vmatprep.subr.mxu0 0.0
    %1658 = vmatpush1.msra.mxu0 %v1616
    %1659 = vmatprep.subr.mxu0 0.0
    %1660 = vmatpush1.msra.mxu0 %v1615
    %1661 = vmatprep.subr.mxu0 0.0
    %1662 = vmatpush1.msra.mxu0 %v1614
    %1663 = vmatprep.subr.mxu0 0.0
    %1664 = vmatpush1.msra.mxu0 %v1613
    %1665 = vmatprep.subr.mxu0 0.0
    %1666 = vmatpush1.msra.mxu0 %v1612
    %1667 = vmatprep.subr.mxu0 0.0
    %1668 = vmatpush2.msra.mxu0 0.0
    %1669 = vmatprep.subr.mxu0 0.0
    %1670 = vmatpush2.msra.mxu0 0.0
    %1671 = vmatprep.subr.mxu0 0.0
    %1672 = vmatpush2.msra.mxu0 0.0
    %1673 = vmatprep.subr.mxu0 0.0
    %1674 = vmatpush2.msra.mxu0 0.0
    %1675 = vmatprep.subr.mxu0 0.0
    %1676 = vmatpush2.msra.mxu0 0.0
    %1677 = vmatprep.subr.mxu0 0.0
    %1678 = vmatpush2.msra.mxu0 0.0
    %1679 = vmatprep.subr.mxu0 0.0
    %1680 = vmatpush2.msra.mxu0 0.0
    %1681 = vmatprep.subr.mxu0 0.0
    %1682 = vmatpush2.msra.mxu0 0.0
    %1683 = vmatprep.subr.mxu0 0.0
    %1684 = vmatpush2.msra.mxu0 0.0
    %1685 = vmatprep.subr.mxu0 0.0
    %1686 = vmatpush2.msra.mxu0 0.0
    %1687 = vmatprep.subr.mxu0 0.0
    %1688 = vmatpush2.msra.mxu0 0.0
    %1689 = vmatprep.subr.mxu0 0.0
    %1690 = vmatpush2.msra.mxu0 0.0
    %1691 = vmatprep.subr.mxu0 0.0
    %1692 = vmatpush2.msra.mxu0 0.0
    %1693 = vmatprep.subr.mxu0 0.0
    %1694 = vmatpush2.msra.mxu0 0.0
    %1695 = vmatprep.subr.mxu0 0.0
    %1696 = vmatpush2.msra.mxu0 0.0
    %1697 = vmatprep.subr.mxu0 0.0
    %1698 = vmatpush2.msra.mxu0 0.0
    %1699 = vmatprep.mubr.f32.mxu0 0.0
    %1700 = vmatmul.mubr.f32.gmra.mxu0 %v1611
    %v1701 = vpop.f32.mrf.mxu0
    %v1702 = vadd.f32 %v1633, %v1701
    %v1703 = vpop.f32.mrf.mxu0
    %1704 = vdwg.mxu0
    %1705 = vst [vmem:[#allocation12] sm:$0xff] %v1702
    // Predicated region
    $region54: #{tpu_custom_call.1} parent=1 // pred_check
      _
    $region55: #{tpu_custom_call.1} parent=1 // pred_check_branch
      %1707 = sbr.rel (0) target = $region57
    $region56: #{tpu_custom_call.1} parent=1 // pred_region
      %s1709 = ssub.s32 128, 128
      %1710 = vsyncadd [#allocation6], %s1709
      %s1712 = sshll.u32 [#allocation12], 4
      %s1713 = int_to_ptr.vmem [resolvable:$true] %s1712
      %1715 = dma.vmem_to_hbm [thread:$0]  %s1713, 128, %s9, [#allocation6]
    $region57: #{tpu_custom_call.1} parent=1 // pred_fallthru
      _
    // Predicated region
    $region58: #{tpu_custom_call.1} parent=1 // pred_check
      _
    $region59: #{tpu_custom_call.1} parent=1 // pred_check_branch
      %1717 = sbr.rel (0) target = $region61
    $region60: #{tpu_custom_call.1} parent=1 // pred_region
      %1718 = dma.done [#allocation6], 128
    $region61: #{tpu_custom_call.1} parent=1 // pred_fallthru
      _
    %1719 = vsyncpa [#allocation5], 1
    %1720 = vsyncpa [#allocation8], 1
    %1721 = vsyncpa [#allocation11], 1
    %1722 = vsyncpa [#allocation6], 1

</llo_original>
